<compile_context>
chip_gen: v6e
topology: v6e:2x2x1
jax: 0.10.0
libtpu: 0.0.40
codegen_flags: <defaults>
</compile_context>

<pallas_src>
import numpy as np
import jax
import jax.numpy as jnp
from jax.experimental import pallas as pl
from jax.experimental.pallas import tpu as pltpu

_LANE = 128
_MAX_SUBLANE_BLOCK = 256                       # up to 256 sublanes x 128 lanes / step
_MAX_BATCH_BLOCK = 8                           # fold at most this many batch rows per block
_VMEM_BUDGET_BYTES = 24 * 1024 * 1024          # double-buffered working set cap (v7x-safe)
_VMEM_LIMIT_BYTES = 48 * 1024 * 1024           # scoped VMEM limit (v7x physical is 64 MiB)


def _spectral_mix_kernel(zs_ref, ws_ref, os_ref):
    """Complex channel mixing per spectral mode:
         out[b, j, m] = sum_i z[b, i, m] * w[i, j, m]   (complex arithmetic)
       Operands are packed as (2[re/im], ..., S_blk, 128) float32; the trailing
       (S_blk, 128) dims are dense vreg tiles, channels/batch sit on leading dims.
       One (b, j) output tile is accumulated at a time to bound vreg pressure."""
    _, Bb, C, Sb, L = zs_ref.shape
    for b in range(Bb):                        # Bb, C small & static -> unrolled VPU loops
        for j in range(C):
            acc_r = jnp.zeros((Sb, L), jnp.float32)
            acc_i = jnp.zeros((Sb, L), jnp.float32)
            for i in range(C):
                zr = zs_ref[0, b, i]           # (Sb, 128)
                zi = zs_ref[1, b, i]
                wr = ws_ref[0, i, j]
                wi = ws_ref[1, i, j]
                acc_r = acc_r + zr * wr - zi * wi
                acc_i = acc_i + zr * wi + zi * wr
            os_ref[0, b, j] = acc_r
            os_ref[1, b, j] = acc_i


def _bytes_per_step(s_blk, b_blk, C):
    # z block + w block + out block, double-buffered, f32
    elems = (2 * b_blk * C + 2 * C * C + 2 * b_blk * C) * s_blk * _LANE
    return 2 * elems * 4


def _largest_divisor_le(n, cap):
    for d in range(min(n, max(cap, 1)), 0, -1):
        if n % d == 0:
            return d
    return 1


def _choose_blocks(M, B, C):
    """Pick (b_blk, s_blk) so the double-buffered working set stays under the VMEM
       budget, with the mode padding kept minimal for small M."""
    s_needed = -(-M // _LANE)
    b_blk = _largest_divisor_le(B, _MAX_BATCH_BLOCK)

    if s_needed <= 8:
        s_blk = s_needed                       # single block == full sublane extent
    else:
        s_blk = min(_MAX_SUBLANE_BLOCK, ((s_needed + 7) // 8) * 8)
        while s_blk > 8 and _bytes_per_step(s_blk, b_blk, C) > _VMEM_BUDGET_BYTES:
            s_blk -= 8
    # if even the smallest mode block is over budget, shed batch rows from the block
    while b_blk > 1 and _bytes_per_step(s_blk, b_blk, C) > _VMEM_BUDGET_BYTES:
        b_blk = _largest_divisor_le(B, b_blk - 1)

    S = ((s_needed + s_blk - 1) // s_blk) * s_blk
    n_s = S // s_blk
    n_b = B // b_blk

    # v7x has 2 TensorCores sharing HBM: guarantee a parallel grid axis with >= 2
    # steps when the mode axis collapses to one block.  Costless w-traffic-wise:
    # w's block index is unchanged across the inner batch axis so it stays resident.
    if n_s == 1 and n_b == 1 and B >= 2:
        b_blk = _largest_divisor_le(B, max(1, b_blk // 2))
        n_b = B // b_blk

    return b_blk, s_blk, n_b, n_s, S


def spectral_mix(z_c, w_c):
    """einsum('bi...,ij...->bj...') with complex operands, computed via Pallas."""
    B, C = z_c.shape[0], z_c.shape[1]
    mode_shape = z_c.shape[2:]
    M = int(np.prod(mode_shape))

    b_blk, s_blk, n_b, n_s, S = _choose_blocks(M, B, C)
    Mpad = S * _LANE

    def prep(x_c, lead):
        # stack real/imag on a leading axis, flatten modes, pad, repack as (S, 128)
        x = jnp.stack([jnp.real(x_c), jnp.imag(x_c)], axis=0).astype(jnp.float32)
        x = x.reshape((2,) + lead + (M,))
        x = jnp.pad(x, [(0, 0)] * (1 + len(lead)) + [(0, Mpad - M)])
        return x.reshape((2,) + lead + (S, _LANE))

    zs = prep(z_c, (B, C))                     # (2, B, C, S, 128)
    ws = prep(w_c, (C, C))                     # (2, C, C, S, 128)

    # grid = (mode blocks, batch blocks): batch is the fastest-varying axis, so w's
    # block index (a function of s only) is constant across consecutive steps and
    # the pipeliner keeps it resident -> w is DMA'd exactly once per mode block.
    z_spec = pl.BlockSpec((2, b_blk, C, s_blk, _LANE), lambda s, b: (0, b, 0, s, 0))
    w_spec = pl.BlockSpec((2, C, C, s_blk, _LANE), lambda s, b: (0, 0, 0, s, 0))

    out = pl.pallas_call(
        _spectral_mix_kernel,
        out_shape=jax.ShapeDtypeStruct((2, B, C, S, _LANE), jnp.float32),
        grid=(n_s, n_b),
        in_specs=[z_spec, w_spec],
        out_specs=z_spec,
        compiler_params=pltpu.CompilerParams(
            dimension_semantics=("parallel", "parallel"),
            vmem_limit_bytes=_VMEM_LIMIT_BYTES),
    )(zs, ws)

    out = out.reshape(2, B, C, Mpad)[:, :, :, :M]
    out_c = (out[0] + 1j * out[1]).astype(jnp.complex64)
    return out_c.reshape((B, C) + mode_shape)


def kernel_convolution_forward(z, weights, modes):
    """Forward pass of KernelConvolution (2D modes, init=False, grid=None).
       z: (B, C, X, T) real; weights: (C, C, m1, m2) complex64.
       FFTs are applied separably so the t-axis transforms only touch the retained
       m1-row band (exactly equivalent to fftn/ifftn + fftshift on the full array)."""
    # TODO(synk): the `grid is not None` branch (inverseDFTn on a non-uniform grid)
    #             and the 3-mode (modes3) variant are not implemented here.
    B, C, X, T = z.shape
    m1, m2 = modes
    f0 = (X // 2 - m1 // 2, X // 2 + m1 // 2)
    f1 = (T // 2 - m2 // 2, T // 2 + m2 // 2)

    # x-axis FFT on the full signal, keep the m1 retained rows, then t-axis FFT on
    # that reduced band only (separability of fftn + commuting slice).
    z_ft_x = jnp.fft.fftshift(jnp.fft.fft(z.astype(jnp.complex64), axis=2), axes=(2,))
    z_band = z_ft_x[:, :, f0[0]:f0[1], :]                                   # (B,C,m1,T)
    z_center = jnp.fft.fftshift(jnp.fft.fft(z_band, axis=3), axes=(3,))
    z_center = z_center[:, :, :, f1[0]:f1[1]]                               # (B,C,m1,m2)

    out_center = spectral_mix(z_center, weights)                            # <- Pallas hot path

    # inverse: t-axis ifft on the m1-row band, then embed into X and x-axis ifft.
    band_t = jnp.zeros((B, C, m1, T), jnp.complex64)
    band_t = band_t.at[:, :, :, f1[0]:f1[1]].set(out_center)
    band_t = jnp.fft.ifft(jnp.fft.ifftshift(band_t, axes=(3,)), axis=3)     # (B,C,m1,T)

    out_ft = jnp.zeros((B, C, X, T), jnp.complex64)
    out_ft = out_ft.at[:, :, f0[0]:f0[1], :].set(band_t)
    out = jnp.fft.ifft(jnp.fft.ifftshift(out_ft, axes=(2,)), axis=2)
    return jnp.real(out)


def kernel_convolution_forward_init(z0, weights, modes):
    """forward_init path (grid=None): S_t * u_0 using the same Pallas mixing kernel."""
    B, C, X, T = z0.shape
    m1, m2 = modes
    f0 = (X // 2 - m1 // 2, X // 2 + m1 // 2)
    # weights -> time domain along the last (mode2) axis, zero-padded to length T
    w_t = jnp.fft.ifft(jnp.fft.ifftshift(weights, axes=(-1,)), n=T, axis=-1)  # (C,C,m1,T)

    z_ft = jnp.fft.fftshift(jnp.fft.fft(z0.astype(jnp.complex64), axis=2), axes=(2,))
    z_center = z_ft[:, :, f0[0]:f0[1], :]                                     # (B,C,m1,T)

    out_center = spectral_mix(z_center, w_t)                                  # <- Pallas hot path

    out_ft = jnp.zeros((B, C, X, T), jnp.complex64)
    out_ft = out_ft.at[:, :, f0[0]:f0[1], :].set(out_center)
    out_ft = jnp.fft.ifftshift(out_ft, axes=(2,))
    return jnp.real(jnp.fft.ifft(out_ft, axis=2))


def _reference_forward(z, weights, modes):
    """Pure-JAX reference (full fftn/ifftn + jnp.einsum) mirroring the PyTorch module."""
    B, C, X, T = z.shape
    m1, m2 = modes
    f0 = (X // 2 - m1 // 2, X // 2 + m1 // 2)
    f1 = (T // 2 - m2 // 2, T // 2 + m2 // 2)
    z_ft = jnp.fft.fftshift(jnp.fft.fftn(z.astype(jnp.complex64), axes=(2, 3)), axes=(2, 3))
    out_c = jnp.einsum('bixt,ijxt->bjxt',
                       z_ft[:, :, f0[0]:f0[1], f1[0]:f1[1]], weights)
    out_ft = jnp.zeros((B, C, X, T), jnp.complex64)
    out_ft = out_ft.at[:, :, f0[0]:f0[1], f1[0]:f1[1]].set(out_c)
    out_ft = jnp.fft.ifftshift(out_ft, axes=(2, 3))
    return jnp.real(jnp.fft.ifftn(out_ft, axes=(2, 3)))


def _reference_forward_init(z0, weights, modes):
    """Pure-JAX reference for the forward_init (S_t * u_0) path."""
    B, C, X, T = z0.shape
    m1, m2 = modes
    f0 = (X // 2 - m1 // 2, X // 2 + m1 // 2)
    w_t = jnp.fft.ifft(jnp.fft.ifftshift(weights, axes=(-1,)), n=T, axis=-1)
    z_ft = jnp.fft.fftshift(jnp.fft.fft(z0.astype(jnp.complex64), axis=2), axes=(2,))
    out_c = jnp.einsum('bixt,ijxt->bjxt', z_ft[:, :, f0[0]:f0[1], :], w_t)
    out_ft = jnp.zeros((B, C, X, T), jnp.complex64)
    out_ft = out_ft.at[:, :, f0[0]:f0[1], :].set(out_c)
    out_ft = jnp.fft.ifftshift(out_ft, axes=(2,))
    return jnp.real(jnp.fft.ifft(out_ft, axis=2))


def _make_weights(key, C, m1, m2):
    kwr, kwi = jax.random.split(key)
    scale = 1.0 / (C ** 2)
    w_real = scale * jax.random.uniform(kwr, (C, C, m1, m2), dtype=jnp.float32)
    w_imag = scale * jax.random.uniform(kwi, (C, C, m1, m2), dtype=jnp.float32)
    return (w_real + 1j * w_imag).astype(jnp.complex64)


if __name__ == "__main__":
    key = jax.random.PRNGKey(0)
    kz, kw, kz2, kw2 = jax.random.split(key, 4)

    # Small shapes consistent with the module: z (batch, channels, dim_x, dim_t)
    B, C, X, T = 2, 4, 16, 16
    modes1, modes2 = 8, 8

    z = jax.random.normal(kz, (B, C, X, T), dtype=jnp.float32)
    weights = _make_weights(kw, C, modes1, modes2)

    fwd = jax.jit(lambda zz, ww: kernel_convolution_forward(zz, ww, (modes1, modes2)))
    out = fwd(z, weights)
    jax.block_until_ready(out)
    ref = _reference_forward(z, weights, (modes1, modes2))
    np.testing.assert_allclose(np.asarray(out), np.asarray(ref), rtol=1e-4, atol=1e-5)

    # forward_init path (S_t * u_0), validated numerically as well.
    fwd_init = jax.jit(
        lambda zz, ww: kernel_convolution_forward_init(zz, ww, (modes1, modes2)))
    out_init = fwd_init(z, weights)
    jax.block_until_ready(out_init)
    ref_init = _reference_forward_init(z, weights, (modes1, modes2))
    np.testing.assert_allclose(np.asarray(out_init), np.asarray(ref_init),
                               rtol=1e-4, atol=1e-5)

    assert out.shape == (B, C, X, T) and out_init.shape == (B, C, X, T)

    # Slightly larger case exercising batch folding (Bb=2 inside the block) plus a
    # 2-step batch grid axis.
    B2, X2, T2, m1b, m2b = 4, 32, 32, 16, 16
    z2 = jax.random.normal(kz2, (B2, C, X2, T2), dtype=jnp.float32)
    weights2 = _make_weights(kw2, C, m1b, m2b)
    fwd2 = jax.jit(lambda zz, ww: kernel_convolution_forward(zz, ww, (m1b, m2b)))
    out2 = fwd2(z2, weights2)
    jax.block_until_ready(out2)
    ref2 = _reference_forward(z2, weights2, (m1b, m2b))
    np.testing.assert_allclose(np.asarray(out2), np.asarray(ref2), rtol=1e-4, atol=1e-5)

    print("KERNEL_OK")
</pallas_src>

<mosaic_0001>
module attributes {stable_mosaic.version = 11 : i64} {
  func.func @_spectral_mix_kernel(%arg0: i32, %arg1: i32, %arg2: memref<2x1x4x1x128xf32, #tpu.memory_space<vmem>>, %arg3: memref<2x4x4x1x128xf32, #tpu.memory_space<vmem>>, %arg4: memref<2x1x4x1x128xf32, #tpu.memory_space<vmem>>) attributes {dimension_semantics = [#tpu.dimension_semantics<parallel>, #tpu.dimension_semantics<parallel>], iteration_bounds = array<i64: 1, 2>, scalar_prefetch = 0 : i64, scratch_operands = 0 : i64, tpu.core_type = #tpu.core_type<tc>, window_params = [{transform_indices = @transform_0, window_bounds = array<i64: 2, 1, 4, 1, 128>}, {transform_indices = @transform_1, window_bounds = array<i64: 2, 4, 4, 1, 128>}, {transform_indices = @transform_2, window_bounds = array<i64: 2, 1, 4, 1, 128>}]} {
    %cst = arith.constant 0.000000e+00 : f32
    %0 = vector.broadcast %cst : f32 to vector<1x128xf32>
    %cst_0 = arith.constant 0.000000e+00 : f32
    %1 = vector.broadcast %cst_0 : f32 to vector<1x128xf32>
    %c0 = arith.constant 0 : index
    %c0_1 = arith.constant 0 : index
    %c0_2 = arith.constant 0 : index
    %c0_3 = arith.constant 0 : index
    %c0_4 = arith.constant 0 : index
    %2 = vector.load %arg2[%c0, %c0_1, %c0_2, %c0_3, %c0_4] : memref<2x1x4x1x128xf32, #tpu.memory_space<vmem>>, vector<1x1x1x1x128xf32>
    %3 = vector.shape_cast %2 : vector<1x1x1x1x128xf32> to vector<1x128xf32>
    %c1 = arith.constant 1 : index
    %c0_5 = arith.constant 0 : index
    %c0_6 = arith.constant 0 : index
    %c0_7 = arith.constant 0 : index
    %c0_8 = arith.constant 0 : index
    %4 = vector.load %arg2[%c1, %c0_5, %c0_6, %c0_7, %c0_8] : memref<2x1x4x1x128xf32, #tpu.memory_space<vmem>>, vector<1x1x1x1x128xf32>
    %5 = vector.shape_cast %4 : vector<1x1x1x1x128xf32> to vector<1x128xf32>
    %c0_9 = arith.constant 0 : index
    %c0_10 = arith.constant 0 : index
    %c0_11 = arith.constant 0 : index
    %c0_12 = arith.constant 0 : index
    %c0_13 = arith.constant 0 : index
    %6 = vector.load %arg3[%c0_9, %c0_10, %c0_11, %c0_12, %c0_13] : memref<2x4x4x1x128xf32, #tpu.memory_space<vmem>>, vector<1x1x1x1x128xf32>
    %7 = vector.shape_cast %6 : vector<1x1x1x1x128xf32> to vector<1x128xf32>
    %c1_14 = arith.constant 1 : index
    %c0_15 = arith.constant 0 : index
    %c0_16 = arith.constant 0 : index
    %c0_17 = arith.constant 0 : index
    %c0_18 = arith.constant 0 : index
    %8 = vector.load %arg3[%c1_14, %c0_15, %c0_16, %c0_17, %c0_18] : memref<2x4x4x1x128xf32, #tpu.memory_space<vmem>>, vector<1x1x1x1x128xf32>
    %9 = vector.shape_cast %8 : vector<1x1x1x1x128xf32> to vector<1x128xf32>
    %10 = arith.mulf %3, %7 : vector<1x128xf32>
    %11 = arith.addf %0, %10 : vector<1x128xf32>
    %12 = arith.mulf %5, %9 : vector<1x128xf32>
    %13 = arith.subf %11, %12 : vector<1x128xf32>
    %14 = arith.mulf %3, %9 : vector<1x128xf32>
    %15 = arith.addf %1, %14 : vector<1x128xf32>
    %16 = arith.mulf %5, %7 : vector<1x128xf32>
    %17 = arith.addf %15, %16 : vector<1x128xf32>
    %c0_19 = arith.constant 0 : index
    %c0_20 = arith.constant 0 : index
    %c1_21 = arith.constant 1 : index
    %c0_22 = arith.constant 0 : index
    %c0_23 = arith.constant 0 : index
    %18 = vector.load %arg2[%c0_19, %c0_20, %c1_21, %c0_22, %c0_23] : memref<2x1x4x1x128xf32, #tpu.memory_space<vmem>>, vector<1x1x1x1x128xf32>
    %19 = vector.shape_cast %18 : vector<1x1x1x1x128xf32> to vector<1x128xf32>
    %c1_24 = arith.constant 1 : index
    %c0_25 = arith.constant 0 : index
    %c1_26 = arith.constant 1 : index
    %c0_27 = arith.constant 0 : index
    %c0_28 = arith.constant 0 : index
    %20 = vector.load %arg2[%c1_24, %c0_25, %c1_26, %c0_27, %c0_28] : memref<2x1x4x1x128xf32, #tpu.memory_space<vmem>>, vector<1x1x1x1x128xf32>
    %21 = vector.shape_cast %20 : vector<1x1x1x1x128xf32> to vector<1x128xf32>
    %c0_29 = arith.constant 0 : index
    %c1_30 = arith.constant 1 : index
    %c0_31 = arith.constant 0 : index
    %c0_32 = arith.constant 0 : index
    %c0_33 = arith.constant 0 : index
    %22 = vector.load %arg3[%c0_29, %c1_30, %c0_31, %c0_32, %c0_33] : memref<2x4x4x1x128xf32, #tpu.memory_space<vmem>>, vector<1x1x1x1x128xf32>
    %23 = vector.shape_cast %22 : vector<1x1x1x1x128xf32> to vector<1x128xf32>
    %c1_34 = arith.constant 1 : index
    %c1_35 = arith.constant 1 : index
    %c0_36 = arith.constant 0 : index
    %c0_37 = arith.constant 0 : index
    %c0_38 = arith.constant 0 : index
    %24 = vector.load %arg3[%c1_34, %c1_35, %c0_36, %c0_37, %c0_38] : memref<2x4x4x1x128xf32, #tpu.memory_space<vmem>>, vector<1x1x1x1x128xf32>
    %25 = vector.shape_cast %24 : vector<1x1x1x1x128xf32> to vector<1x128xf32>
    %26 = arith.mulf %19, %23 : vector<1x128xf32>
    %27 = arith.addf %13, %26 : vector<1x128xf32>
    %28 = arith.mulf %21, %25 : vector<1x128xf32>
    %29 = arith.subf %27, %28 : vector<1x128xf32>
    %30 = arith.mulf %19, %25 : vector<1x128xf32>
    %31 = arith.addf %17, %30 : vector<1x128xf32>
    %32 = arith.mulf %21, %23 : vector<1x128xf32>
    %33 = arith.addf %31, %32 : vector<1x128xf32>
    %c0_39 = arith.constant 0 : index
    %c0_40 = arith.constant 0 : index
    %c2 = arith.constant 2 : index
    %c0_41 = arith.constant 0 : index
    %c0_42 = arith.constant 0 : index
    %34 = vector.load %arg2[%c0_39, %c0_40, %c2, %c0_41, %c0_42] : memref<2x1x4x1x128xf32, #tpu.memory_space<vmem>>, vector<1x1x1x1x128xf32>
    %35 = vector.shape_cast %34 : vector<1x1x1x1x128xf32> to vector<1x128xf32>
    %c1_43 = arith.constant 1 : index
    %c0_44 = arith.constant 0 : index
    %c2_45 = arith.constant 2 : index
    %c0_46 = arith.constant 0 : index
    %c0_47 = arith.constant 0 : index
    %36 = vector.load %arg2[%c1_43, %c0_44, %c2_45, %c0_46, %c0_47] : memref<2x1x4x1x128xf32, #tpu.memory_space<vmem>>, vector<1x1x1x1x128xf32>
    %37 = vector.shape_cast %36 : vector<1x1x1x1x128xf32> to vector<1x128xf32>
    %c0_48 = arith.constant 0 : index
    %c2_49 = arith.constant 2 : index
    %c0_50 = arith.constant 0 : index
    %c0_51 = arith.constant 0 : index
    %c0_52 = arith.constant 0 : index
    %38 = vector.load %arg3[%c0_48, %c2_49, %c0_50, %c0_51, %c0_52] : memref<2x4x4x1x128xf32, #tpu.memory_space<vmem>>, vector<1x1x1x1x128xf32>
    %39 = vector.shape_cast %38 : vector<1x1x1x1x128xf32> to vector<1x128xf32>
    %c1_53 = arith.constant 1 : index
    %c2_54 = arith.constant 2 : index
    %c0_55 = arith.constant 0 : index
    %c0_56 = arith.constant 0 : index
    %c0_57 = arith.constant 0 : index
    %40 = vector.load %arg3[%c1_53, %c2_54, %c0_55, %c0_56, %c0_57] : memref<2x4x4x1x128xf32, #tpu.memory_space<vmem>>, vector<1x1x1x1x128xf32>
    %41 = vector.shape_cast %40 : vector<1x1x1x1x128xf32> to vector<1x128xf32>
    %42 = arith.mulf %35, %39 : vector<1x128xf32>
    %43 = arith.addf %29, %42 : vector<1x128xf32>
    %44 = arith.mulf %37, %41 : vector<1x128xf32>
    %45 = arith.subf %43, %44 : vector<1x128xf32>
    %46 = arith.mulf %35, %41 : vector<1x128xf32>
    %47 = arith.addf %33, %46 : vector<1x128xf32>
    %48 = arith.mulf %37, %39 : vector<1x128xf32>
    %49 = arith.addf %47, %48 : vector<1x128xf32>
    %c0_58 = arith.constant 0 : index
    %c0_59 = arith.constant 0 : index
    %c3 = arith.constant 3 : index
    %c0_60 = arith.constant 0 : index
    %c0_61 = arith.constant 0 : index
    %50 = vector.load %arg2[%c0_58, %c0_59, %c3, %c0_60, %c0_61] : memref<2x1x4x1x128xf32, #tpu.memory_space<vmem>>, vector<1x1x1x1x128xf32>
    %51 = vector.shape_cast %50 : vector<1x1x1x1x128xf32> to vector<1x128xf32>
    %c1_62 = arith.constant 1 : index
    %c0_63 = arith.constant 0 : index
    %c3_64 = arith.constant 3 : index
    %c0_65 = arith.constant 0 : index
    %c0_66 = arith.constant 0 : index
    %52 = vector.load %arg2[%c1_62, %c0_63, %c3_64, %c0_65, %c0_66] : memref<2x1x4x1x128xf32, #tpu.memory_space<vmem>>, vector<1x1x1x1x128xf32>
    %53 = vector.shape_cast %52 : vector<1x1x1x1x128xf32> to vector<1x128xf32>
    %c0_67 = arith.constant 0 : index
    %c3_68 = arith.constant 3 : index
    %c0_69 = arith.constant 0 : index
    %c0_70 = arith.constant 0 : index
    %c0_71 = arith.constant 0 : index
    %54 = vector.load %arg3[%c0_67, %c3_68, %c0_69, %c0_70, %c0_71] : memref<2x4x4x1x128xf32, #tpu.memory_space<vmem>>, vector<1x1x1x1x128xf32>
    %55 = vector.shape_cast %54 : vector<1x1x1x1x128xf32> to vector<1x128xf32>
    %c1_72 = arith.constant 1 : index
    %c3_73 = arith.constant 3 : index
    %c0_74 = arith.constant 0 : index
    %c0_75 = arith.constant 0 : index
    %c0_76 = arith.constant 0 : index
    %56 = vector.load %arg3[%c1_72, %c3_73, %c0_74, %c0_75, %c0_76] : memref<2x4x4x1x128xf32, #tpu.memory_space<vmem>>, vector<1x1x1x1x128xf32>
    %57 = vector.shape_cast %56 : vector<1x1x1x1x128xf32> to vector<1x128xf32>
    %58 = arith.mulf %51, %55 : vector<1x128xf32>
    %59 = arith.addf %45, %58 : vector<1x128xf32>
    %60 = arith.mulf %53, %57 : vector<1x128xf32>
    %61 = arith.subf %59, %60 : vector<1x128xf32>
    %62 = arith.mulf %51, %57 : vector<1x128xf32>
    %63 = arith.addf %49, %62 : vector<1x128xf32>
    %64 = arith.mulf %53, %55 : vector<1x128xf32>
    %65 = arith.addf %63, %64 : vector<1x128xf32>
    %c0_77 = arith.constant 0 : index
    %c0_78 = arith.constant 0 : index
    %c0_79 = arith.constant 0 : index
    %c0_80 = arith.constant 0 : index
    %c0_81 = arith.constant 0 : index
    %66 = vector.load %arg4[%c0_77, %c0_78, %c0_79, %c0_80, %c0_81] : memref<2x1x4x1x128xf32, #tpu.memory_space<vmem>>, vector<1x1x1x1x128xf32>
    %67 = vector.shape_cast %66 : vector<1x1x1x1x128xf32> to vector<1x128xf32>
    %68 = vector.shape_cast %61 : vector<1x128xf32> to vector<1x1x1x1x128xf32>
    tpu.vector_store %arg4[%c0_77, %c0_78, %c0_79, %c0_80, %c0_81], %68 {strides = array<i32>} : memref<2x1x4x1x128xf32, #tpu.memory_space<vmem>>, vector<1x1x1x1x128xf32>,
    %c1_82 = arith.constant 1 : index
    %c0_83 = arith.constant 0 : index
    %c0_84 = arith.constant 0 : index
    %c0_85 = arith.constant 0 : index
    %c0_86 = arith.constant 0 : index
    %69 = vector.load %arg4[%c1_82, %c0_83, %c0_84, %c0_85, %c0_86] : memref<2x1x4x1x128xf32, #tpu.memory_space<vmem>>, vector<1x1x1x1x128xf32>
    %70 = vector.shape_cast %69 : vector<1x1x1x1x128xf32> to vector<1x128xf32>
    %71 = vector.shape_cast %65 : vector<1x128xf32> to vector<1x1x1x1x128xf32>
    tpu.vector_store %arg4[%c1_82, %c0_83, %c0_84, %c0_85, %c0_86], %71 {strides = array<i32>} : memref<2x1x4x1x128xf32, #tpu.memory_space<vmem>>, vector<1x1x1x1x128xf32>,
    %cst_87 = arith.constant 0.000000e+00 : f32
    %72 = vector.broadcast %cst_87 : f32 to vector<1x128xf32>
    %cst_88 = arith.constant 0.000000e+00 : f32
    %73 = vector.broadcast %cst_88 : f32 to vector<1x128xf32>
    %c0_89 = arith.constant 0 : index
    %c0_90 = arith.constant 0 : index
    %c0_91 = arith.constant 0 : index
    %c0_92 = arith.constant 0 : index
    %c0_93 = arith.constant 0 : index
    %74 = vector.load %arg2[%c0_89, %c0_90, %c0_91, %c0_92, %c0_93] : memref<2x1x4x1x128xf32, #tpu.memory_space<vmem>>, vector<1x1x1x1x128xf32>
    %75 = vector.shape_cast %74 : vector<1x1x1x1x128xf32> to vector<1x128xf32>
    %c1_94 = arith.constant 1 : index
    %c0_95 = arith.constant 0 : index
    %c0_96 = arith.constant 0 : index
    %c0_97 = arith.constant 0 : index
    %c0_98 = arith.constant 0 : index
    %76 = vector.load %arg2[%c1_94, %c0_95, %c0_96, %c0_97, %c0_98] : memref<2x1x4x1x128xf32, #tpu.memory_space<vmem>>, vector<1x1x1x1x128xf32>
    %77 = vector.shape_cast %76 : vector<1x1x1x1x128xf32> to vector<1x128xf32>
    %c0_99 = arith.constant 0 : index
    %c0_100 = arith.constant 0 : index
    %c1_101 = arith.constant 1 : index
    %c0_102 = arith.constant 0 : index
    %c0_103 = arith.constant 0 : index
    %78 = vector.load %arg3[%c0_99, %c0_100, %c1_101, %c0_102, %c0_103] : memref<2x4x4x1x128xf32, #tpu.memory_space<vmem>>, vector<1x1x1x1x128xf32>
    %79 = vector.shape_cast %78 : vector<1x1x1x1x128xf32> to vector<1x128xf32>
    %c1_104 = arith.constant 1 : index
    %c0_105 = arith.constant 0 : index
    %c1_106 = arith.constant 1 : index
    %c0_107 = arith.constant 0 : index
    %c0_108 = arith.constant 0 : index
    %80 = vector.load %arg3[%c1_104, %c0_105, %c1_106, %c0_107, %c0_108] : memref<2x4x4x1x128xf32, #tpu.memory_space<vmem>>, vector<1x1x1x1x128xf32>
    %81 = vector.shape_cast %80 : vector<1x1x1x1x128xf32> to vector<1x128xf32>
    %82 = arith.mulf %75, %79 : vector<1x128xf32>
    %83 = arith.addf %72, %82 : vector<1x128xf32>
    %84 = arith.mulf %77, %81 : vector<1x128xf32>
    %85 = arith.subf %83, %84 : vector<1x128xf32>
    %86 = arith.mulf %75, %81 : vector<1x128xf32>
    %87 = arith.addf %73, %86 : vector<1x128xf32>
    %88 = arith.mulf %77, %79 : vector<1x128xf32>
    %89 = arith.addf %87, %88 : vector<1x128xf32>
    %c0_109 = arith.constant 0 : index
    %c0_110 = arith.constant 0 : index
    %c1_111 = arith.constant 1 : index
    %c0_112 = arith.constant 0 : index
    %c0_113 = arith.constant 0 : index
    %90 = vector.load %arg2[%c0_109, %c0_110, %c1_111, %c0_112, %c0_113] : memref<2x1x4x1x128xf32, #tpu.memory_space<vmem>>, vector<1x1x1x1x128xf32>
    %91 = vector.shape_cast %90 : vector<1x1x1x1x128xf32> to vector<1x128xf32>
    %c1_114 = arith.constant 1 : index
    %c0_115 = arith.constant 0 : index
    %c1_116 = arith.constant 1 : index
    %c0_117 = arith.constant 0 : index
    %c0_118 = arith.constant 0 : index
    %92 = vector.load %arg2[%c1_114, %c0_115, %c1_116, %c0_117, %c0_118] : memref<2x1x4x1x128xf32, #tpu.memory_space<vmem>>, vector<1x1x1x1x128xf32>
    %93 = vector.shape_cast %92 : vector<1x1x1x1x128xf32> to vector<1x128xf32>
    %c0_119 = arith.constant 0 : index
    %c1_120 = arith.constant 1 : index
    %c1_121 = arith.constant 1 : index
    %c0_122 = arith.constant 0 : index
    %c0_123 = arith.constant 0 : index
    %94 = vector.load %arg3[%c0_119, %c1_120, %c1_121, %c0_122, %c0_123] : memref<2x4x4x1x128xf32, #tpu.memory_space<vmem>>, vector<1x1x1x1x128xf32>
    %95 = vector.shape_cast %94 : vector<1x1x1x1x128xf32> to vector<1x128xf32>
    %c1_124 = arith.constant 1 : index
    %c1_125 = arith.constant 1 : index
    %c1_126 = arith.constant 1 : index
    %c0_127 = arith.constant 0 : index
    %c0_128 = arith.constant 0 : index
    %96 = vector.load %arg3[%c1_124, %c1_125, %c1_126, %c0_127, %c0_128] : memref<2x4x4x1x128xf32, #tpu.memory_space<vmem>>, vector<1x1x1x1x128xf32>
    %97 = vector.shape_cast %96 : vector<1x1x1x1x128xf32> to vector<1x128xf32>
    %98 = arith.mulf %91, %95 : vector<1x128xf32>
    %99 = arith.addf %85, %98 : vector<1x128xf32>
    %100 = arith.mulf %93, %97 : vector<1x128xf32>
    %101 = arith.subf %99, %100 : vector<1x128xf32>
    %102 = arith.mulf %91, %97 : vector<1x128xf32>
    %103 = arith.addf %89, %102 : vector<1x128xf32>
    %104 = arith.mulf %93, %95 : vector<1x128xf32>
    %105 = arith.addf %103, %104 : vector<1x128xf32>
    %c0_129 = arith.constant 0 : index
    %c0_130 = arith.constant 0 : index
    %c2_131 = arith.constant 2 : index
    %c0_132 = arith.constant 0 : index
    %c0_133 = arith.constant 0 : index
    %106 = vector.load %arg2[%c0_129, %c0_130, %c2_131, %c0_132, %c0_133] : memref<2x1x4x1x128xf32, #tpu.memory_space<vmem>>, vector<1x1x1x1x128xf32>
    %107 = vector.shape_cast %106 : vector<1x1x1x1x128xf32> to vector<1x128xf32>
    %c1_134 = arith.constant 1 : index
    %c0_135 = arith.constant 0 : index
    %c2_136 = arith.constant 2 : index
    %c0_137 = arith.constant 0 : index
    %c0_138 = arith.constant 0 : index
    %108 = vector.load %arg2[%c1_134, %c0_135, %c2_136, %c0_137, %c0_138] : memref<2x1x4x1x128xf32, #tpu.memory_space<vmem>>, vector<1x1x1x1x128xf32>
    %109 = vector.shape_cast %108 : vector<1x1x1x1x128xf32> to vector<1x128xf32>
    %c0_139 = arith.constant 0 : index
    %c2_140 = arith.constant 2 : index
    %c1_141 = arith.constant 1 : index
    %c0_142 = arith.constant 0 : index
    %c0_143 = arith.constant 0 : index
    %110 = vector.load %arg3[%c0_139, %c2_140, %c1_141, %c0_142, %c0_143] : memref<2x4x4x1x128xf32, #tpu.memory_space<vmem>>, vector<1x1x1x1x128xf32>
    %111 = vector.shape_cast %110 : vector<1x1x1x1x128xf32> to vector<1x128xf32>
    %c1_144 = arith.constant 1 : index
    %c2_145 = arith.constant 2 : index
    %c1_146 = arith.constant 1 : index
    %c0_147 = arith.constant 0 : index
    %c0_148 = arith.constant 0 : index
    %112 = vector.load %arg3[%c1_144, %c2_145, %c1_146, %c0_147, %c0_148] : memref<2x4x4x1x128xf32, #tpu.memory_space<vmem>>, vector<1x1x1x1x128xf32>
    %113 = vector.shape_cast %112 : vector<1x1x1x1x128xf32> to vector<1x128xf32>
    %114 = arith.mulf %107, %111 : vector<1x128xf32>
    %115 = arith.addf %101, %114 : vector<1x128xf32>
    %116 = arith.mulf %109, %113 : vector<1x128xf32>
    %117 = arith.subf %115, %116 : vector<1x128xf32>
    %118 = arith.mulf %107, %113 : vector<1x128xf32>
    %119 = arith.addf %105, %118 : vector<1x128xf32>
    %120 = arith.mulf %109, %111 : vector<1x128xf32>
    %121 = arith.addf %119, %120 : vector<1x128xf32>
    %c0_149 = arith.constant 0 : index
    %c0_150 = arith.constant 0 : index
    %c3_151 = arith.constant 3 : index
    %c0_152 = arith.constant 0 : index
    %c0_153 = arith.constant 0 : index
    %122 = vector.load %arg2[%c0_149, %c0_150, %c3_151, %c0_152, %c0_153] : memref<2x1x4x1x128xf32, #tpu.memory_space<vmem>>, vector<1x1x1x1x128xf32>
    %123 = vector.shape_cast %122 : vector<1x1x1x1x128xf32> to vector<1x128xf32>
    %c1_154 = arith.constant 1 : index
    %c0_155 = arith.constant 0 : index
    %c3_156 = arith.constant 3 : index
    %c0_157 = arith.constant 0 : index
    %c0_158 = arith.constant 0 : index
    %124 = vector.load %arg2[%c1_154, %c0_155, %c3_156, %c0_157, %c0_158] : memref<2x1x4x1x128xf32, #tpu.memory_space<vmem>>, vector<1x1x1x1x128xf32>
    %125 = vector.shape_cast %124 : vector<1x1x1x1x128xf32> to vector<1x128xf32>
    %c0_159 = arith.constant 0 : index
    %c3_160 = arith.constant 3 : index
    %c1_161 = arith.constant 1 : index
    %c0_162 = arith.constant 0 : index
    %c0_163 = arith.constant 0 : index
    %126 = vector.load %arg3[%c0_159, %c3_160, %c1_161, %c0_162, %c0_163] : memref<2x4x4x1x128xf32, #tpu.memory_space<vmem>>, vector<1x1x1x1x128xf32>
    %127 = vector.shape_cast %126 : vector<1x1x1x1x128xf32> to vector<1x128xf32>
    %c1_164 = arith.constant 1 : index
    %c3_165 = arith.constant 3 : index
    %c1_166 = arith.constant 1 : index
    %c0_167 = arith.constant 0 : index
    %c0_168 = arith.constant 0 : index
    %128 = vector.load %arg3[%c1_164, %c3_165, %c1_166, %c0_167, %c0_168] : memref<2x4x4x1x128xf32, #tpu.memory_space<vmem>>, vector<1x1x1x1x128xf32>
    %129 = vector.shape_cast %128 : vector<1x1x1x1x128xf32> to vector<1x128xf32>
    %130 = arith.mulf %123, %127 : vector<1x128xf32>
    %131 = arith.addf %117, %130 : vector<1x128xf32>
    %132 = arith.mulf %125, %129 : vector<1x128xf32>
    %133 = arith.subf %131, %132 : vector<1x128xf32>
    %134 = arith.mulf %123, %129 : vector<1x128xf32>
    %135 = arith.addf %121, %134 : vector<1x128xf32>
    %136 = arith.mulf %125, %127 : vector<1x128xf32>
    %137 = arith.addf %135, %136 : vector<1x128xf32>
    %c0_169 = arith.constant 0 : index
    %c0_170 = arith.constant 0 : index
    %c1_171 = arith.constant 1 : index
    %c0_172 = arith.constant 0 : index
    %c0_173 = arith.constant 0 : index
    %138 = vector.load %arg4[%c0_169, %c0_170, %c1_171, %c0_172, %c0_173] : memref<2x1x4x1x128xf32, #tpu.memory_space<vmem>>, vector<1x1x1x1x128xf32>
    %139 = vector.shape_cast %138 : vector<1x1x1x1x128xf32> to vector<1x128xf32>
    %140 = vector.shape_cast %133 : vector<1x128xf32> to vector<1x1x1x1x128xf32>
    tpu.vector_store %arg4[%c0_169, %c0_170, %c1_171, %c0_172, %c0_173], %140 {strides = array<i32>} : memref<2x1x4x1x128xf32, #tpu.memory_space<vmem>>, vector<1x1x1x1x128xf32>,
    %c1_174 = arith.constant 1 : index
    %c0_175 = arith.constant 0 : index
    %c1_176 = arith.constant 1 : index
    %c0_177 = arith.constant 0 : index
    %c0_178 = arith.constant 0 : index
    %141 = vector.load %arg4[%c1_174, %c0_175, %c1_176, %c0_177, %c0_178] : memref<2x1x4x1x128xf32, #tpu.memory_space<vmem>>, vector<1x1x1x1x128xf32>
    %142 = vector.shape_cast %141 : vector<1x1x1x1x128xf32> to vector<1x128xf32>
    %143 = vector.shape_cast %137 : vector<1x128xf32> to vector<1x1x1x1x128xf32>
    tpu.vector_store %arg4[%c1_174, %c0_175, %c1_176, %c0_177, %c0_178], %143 {strides = array<i32>} : memref<2x1x4x1x128xf32, #tpu.memory_space<vmem>>, vector<1x1x1x1x128xf32>,
    %cst_179 = arith.constant 0.000000e+00 : f32
    %144 = vector.broadcast %cst_179 : f32 to vector<1x128xf32>
    %cst_180 = arith.constant 0.000000e+00 : f32
    %145 = vector.broadcast %cst_180 : f32 to vector<1x128xf32>
    %c0_181 = arith.constant 0 : index
    %c0_182 = arith.constant 0 : index
    %c0_183 = arith.constant 0 : index
    %c0_184 = arith.constant 0 : index
    %c0_185 = arith.constant 0 : index
    %146 = vector.load %arg2[%c0_181, %c0_182, %c0_183, %c0_184, %c0_185] : memref<2x1x4x1x128xf32, #tpu.memory_space<vmem>>, vector<1x1x1x1x128xf32>
    %147 = vector.shape_cast %146 : vector<1x1x1x1x128xf32> to vector<1x128xf32>
    %c1_186 = arith.constant 1 : index
    %c0_187 = arith.constant 0 : index
    %c0_188 = arith.constant 0 : index
    %c0_189 = arith.constant 0 : index
    %c0_190 = arith.constant 0 : index
    %148 = vector.load %arg2[%c1_186, %c0_187, %c0_188, %c0_189, %c0_190] : memref<2x1x4x1x128xf32, #tpu.memory_space<vmem>>, vector<1x1x1x1x128xf32>
    %149 = vector.shape_cast %148 : vector<1x1x1x1x128xf32> to vector<1x128xf32>
    %c0_191 = arith.constant 0 : index
    %c0_192 = arith.constant 0 : index
    %c2_193 = arith.constant 2 : index
    %c0_194 = arith.constant 0 : index
    %c0_195 = arith.constant 0 : index
    %150 = vector.load %arg3[%c0_191, %c0_192, %c2_193, %c0_194, %c0_195] : memref<2x4x4x1x128xf32, #tpu.memory_space<vmem>>, vector<1x1x1x1x128xf32>
    %151 = vector.shape_cast %150 : vector<1x1x1x1x128xf32> to vector<1x128xf32>
    %c1_196 = arith.constant 1 : index
    %c0_197 = arith.constant 0 : index
    %c2_198 = arith.constant 2 : index
    %c0_199 = arith.constant 0 : index
    %c0_200 = arith.constant 0 : index
    %152 = vector.load %arg3[%c1_196, %c0_197, %c2_198, %c0_199, %c0_200] : memref<2x4x4x1x128xf32, #tpu.memory_space<vmem>>, vector<1x1x1x1x128xf32>
    %153 = vector.shape_cast %152 : vector<1x1x1x1x128xf32> to vector<1x128xf32>
    %154 = arith.mulf %147, %151 : vector<1x128xf32>
    %155 = arith.addf %144, %154 : vector<1x128xf32>
    %156 = arith.mulf %149, %153 : vector<1x128xf32>
    %157 = arith.subf %155, %156 : vector<1x128xf32>
    %158 = arith.mulf %147, %153 : vector<1x128xf32>
    %159 = arith.addf %145, %158 : vector<1x128xf32>
    %160 = arith.mulf %149, %151 : vector<1x128xf32>
    %161 = arith.addf %159, %160 : vector<1x128xf32>
    %c0_201 = arith.constant 0 : index
    %c0_202 = arith.constant 0 : index
    %c1_203 = arith.constant 1 : index
    %c0_204 = arith.constant 0 : index
    %c0_205 = arith.constant 0 : index
    %162 = vector.load %arg2[%c0_201, %c0_202, %c1_203, %c0_204, %c0_205] : memref<2x1x4x1x128xf32, #tpu.memory_space<vmem>>, vector<1x1x1x1x128xf32>
    %163 = vector.shape_cast %162 : vector<1x1x1x1x128xf32> to vector<1x128xf32>
    %c1_206 = arith.constant 1 : index
    %c0_207 = arith.constant 0 : index
    %c1_208 = arith.constant 1 : index
    %c0_209 = arith.constant 0 : index
    %c0_210 = arith.constant 0 : index
    %164 = vector.load %arg2[%c1_206, %c0_207, %c1_208, %c0_209, %c0_210] : memref<2x1x4x1x128xf32, #tpu.memory_space<vmem>>, vector<1x1x1x1x128xf32>
    %165 = vector.shape_cast %164 : vector<1x1x1x1x128xf32> to vector<1x128xf32>
    %c0_211 = arith.constant 0 : index
    %c1_212 = arith.constant 1 : index
    %c2_213 = arith.constant 2 : index
    %c0_214 = arith.constant 0 : index
    %c0_215 = arith.constant 0 : index
    %166 = vector.load %arg3[%c0_211, %c1_212, %c2_213, %c0_214, %c0_215] : memref<2x4x4x1x128xf32, #tpu.memory_space<vmem>>, vector<1x1x1x1x128xf32>
    %167 = vector.shape_cast %166 : vector<1x1x1x1x128xf32> to vector<1x128xf32>
    %c1_216 = arith.constant 1 : index
    %c1_217 = arith.constant 1 : index
    %c2_218 = arith.constant 2 : index
    %c0_219 = arith.constant 0 : index
    %c0_220 = arith.constant 0 : index
    %168 = vector.load %arg3[%c1_216, %c1_217, %c2_218, %c0_219, %c0_220] : memref<2x4x4x1x128xf32, #tpu.memory_space<vmem>>, vector<1x1x1x1x128xf32>
    %169 = vector.shape_cast %168 : vector<1x1x1x1x128xf32> to vector<1x128xf32>
    %170 = arith.mulf %163, %167 : vector<1x128xf32>
    %171 = arith.addf %157, %170 : vector<1x128xf32>
    %172 = arith.mulf %165, %169 : vector<1x128xf32>
    %173 = arith.subf %171, %172 : vector<1x128xf32>
    %174 = arith.mulf %163, %169 : vector<1x128xf32>
    %175 = arith.addf %161, %174 : vector<1x128xf32>
    %176 = arith.mulf %165, %167 : vector<1x128xf32>
    %177 = arith.addf %175, %176 : vector<1x128xf32>
    %c0_221 = arith.constant 0 : index
    %c0_222 = arith.constant 0 : index
    %c2_223 = arith.constant 2 : index
    %c0_224 = arith.constant 0 : index
    %c0_225 = arith.constant 0 : index
    %178 = vector.load %arg2[%c0_221, %c0_222, %c2_223, %c0_224, %c0_225] : memref<2x1x4x1x128xf32, #tpu.memory_space<vmem>>, vector<1x1x1x1x128xf32>
    %179 = vector.shape_cast %178 : vector<1x1x1x1x128xf32> to vector<1x128xf32>
    %c1_226 = arith.constant 1 : index
    %c0_227 = arith.constant 0 : index
    %c2_228 = arith.constant 2 : index
    %c0_229 = arith.constant 0 : index
    %c0_230 = arith.constant 0 : index
    %180 = vector.load %arg2[%c1_226, %c0_227, %c2_228, %c0_229, %c0_230] : memref<2x1x4x1x128xf32, #tpu.memory_space<vmem>>, vector<1x1x1x1x128xf32>
    %181 = vector.shape_cast %180 : vector<1x1x1x1x128xf32> to vector<1x128xf32>
    %c0_231 = arith.constant 0 : index
    %c2_232 = arith.constant 2 : index
    %c2_233 = arith.constant 2 : index
    %c0_234 = arith.constant 0 : index
    %c0_235 = arith.constant 0 : index
    %182 = vector.load %arg3[%c0_231, %c2_232, %c2_233, %c0_234, %c0_235] : memref<2x4x4x1x128xf32, #tpu.memory_space<vmem>>, vector<1x1x1x1x128xf32>
    %183 = vector.shape_cast %182 : vector<1x1x1x1x128xf32> to vector<1x128xf32>
    %c1_236 = arith.constant 1 : index
    %c2_237 = arith.constant 2 : index
    %c2_238 = arith.constant 2 : index
    %c0_239 = arith.constant 0 : index
    %c0_240 = arith.constant 0 : index
    %184 = vector.load %arg3[%c1_236, %c2_237, %c2_238, %c0_239, %c0_240] : memref<2x4x4x1x128xf32, #tpu.memory_space<vmem>>, vector<1x1x1x1x128xf32>
    %185 = vector.shape_cast %184 : vector<1x1x1x1x128xf32> to vector<1x128xf32>
    %186 = arith.mulf %179, %183 : vector<1x128xf32>
    %187 = arith.addf %173, %186 : vector<1x128xf32>
    %188 = arith.mulf %181, %185 : vector<1x128xf32>
    %189 = arith.subf %187, %188 : vector<1x128xf32>
    %190 = arith.mulf %179, %185 : vector<1x128xf32>
    %191 = arith.addf %177, %190 : vector<1x128xf32>
    %192 = arith.mulf %181, %183 : vector<1x128xf32>
    %193 = arith.addf %191, %192 : vector<1x128xf32>
    %c0_241 = arith.constant 0 : index
    %c0_242 = arith.constant 0 : index
    %c3_243 = arith.constant 3 : index
    %c0_244 = arith.constant 0 : index
    %c0_245 = arith.constant 0 : index
    %194 = vector.load %arg2[%c0_241, %c0_242, %c3_243, %c0_244, %c0_245] : memref<2x1x4x1x128xf32, #tpu.memory_space<vmem>>, vector<1x1x1x1x128xf32>
    %195 = vector.shape_cast %194 : vector<1x1x1x1x128xf32> to vector<1x128xf32>
    %c1_246 = arith.constant 1 : index
    %c0_247 = arith.constant 0 : index
    %c3_248 = arith.constant 3 : index
    %c0_249 = arith.constant 0 : index
    %c0_250 = arith.constant 0 : index
    %196 = vector.load %arg2[%c1_246, %c0_247, %c3_248, %c0_249, %c0_250] : memref<2x1x4x1x128xf32, #tpu.memory_space<vmem>>, vector<1x1x1x1x128xf32>
    %197 = vector.shape_cast %196 : vector<1x1x1x1x128xf32> to vector<1x128xf32>
    %c0_251 = arith.constant 0 : index
    %c3_252 = arith.constant 3 : index
    %c2_253 = arith.constant 2 : index
    %c0_254 = arith.constant 0 : index
    %c0_255 = arith.constant 0 : index
    %198 = vector.load %arg3[%c0_251, %c3_252, %c2_253, %c0_254, %c0_255] : memref<2x4x4x1x128xf32, #tpu.memory_space<vmem>>, vector<1x1x1x1x128xf32>
    %199 = vector.shape_cast %198 : vector<1x1x1x1x128xf32> to vector<1x128xf32>
    %c1_256 = arith.constant 1 : index
    %c3_257 = arith.constant 3 : index
    %c2_258 = arith.constant 2 : index
    %c0_259 = arith.constant 0 : index
    %c0_260 = arith.constant 0 : index
    %200 = vector.load %arg3[%c1_256, %c3_257, %c2_258, %c0_259, %c0_260] : memref<2x4x4x1x128xf32, #tpu.memory_space<vmem>>, vector<1x1x1x1x128xf32>
    %201 = vector.shape_cast %200 : vector<1x1x1x1x128xf32> to vector<1x128xf32>
    %202 = arith.mulf %195, %199 : vector<1x128xf32>
    %203 = arith.addf %189, %202 : vector<1x128xf32>
    %204 = arith.mulf %197, %201 : vector<1x128xf32>
    %205 = arith.subf %203, %204 : vector<1x128xf32>
    %206 = arith.mulf %195, %201 : vector<1x128xf32>
    %207 = arith.addf %193, %206 : vector<1x128xf32>
    %208 = arith.mulf %197, %199 : vector<1x128xf32>
    %209 = arith.addf %207, %208 : vector<1x128xf32>
    %c0_261 = arith.constant 0 : index
    %c0_262 = arith.constant 0 : index
    %c2_263 = arith.constant 2 : index
    %c0_264 = arith.constant 0 : index
    %c0_265 = arith.constant 0 : index
    %210 = vector.load %arg4[%c0_261, %c0_262, %c2_263, %c0_264, %c0_265] : memref<2x1x4x1x128xf32, #tpu.memory_space<vmem>>, vector<1x1x1x1x128xf32>
    %211 = vector.shape_cast %210 : vector<1x1x1x1x128xf32> to vector<1x128xf32>
    %212 = vector.shape_cast %205 : vector<1x128xf32> to vector<1x1x1x1x128xf32>
    tpu.vector_store %arg4[%c0_261, %c0_262, %c2_263, %c0_264, %c0_265], %212 {strides = array<i32>} : memref<2x1x4x1x128xf32, #tpu.memory_space<vmem>>, vector<1x1x1x1x128xf32>,
    %c1_266 = arith.constant 1 : index
    %c0_267 = arith.constant 0 : index
    %c2_268 = arith.constant 2 : index
    %c0_269 = arith.constant 0 : index
    %c0_270 = arith.constant 0 : index
    %213 = vector.load %arg4[%c1_266, %c0_267, %c2_268, %c0_269, %c0_270] : memref<2x1x4x1x128xf32, #tpu.memory_space<vmem>>, vector<1x1x1x1x128xf32>
    %214 = vector.shape_cast %213 : vector<1x1x1x1x128xf32> to vector<1x128xf32>
    %215 = vector.shape_cast %209 : vector<1x128xf32> to vector<1x1x1x1x128xf32>
    tpu.vector_store %arg4[%c1_266, %c0_267, %c2_268, %c0_269, %c0_270], %215 {strides = array<i32>} : memref<2x1x4x1x128xf32, #tpu.memory_space<vmem>>, vector<1x1x1x1x128xf32>,
    %cst_271 = arith.constant 0.000000e+00 : f32
    %216 = vector.broadcast %cst_271 : f32 to vector<1x128xf32>
    %cst_272 = arith.constant 0.000000e+00 : f32
    %217 = vector.broadcast %cst_272 : f32 to vector<1x128xf32>
    %c0_273 = arith.constant 0 : index
    %c0_274 = arith.constant 0 : index
    %c0_275 = arith.constant 0 : index
    %c0_276 = arith.constant 0 : index
    %c0_277 = arith.constant 0 : index
    %218 = vector.load %arg2[%c0_273, %c0_274, %c0_275, %c0_276, %c0_277] : memref<2x1x4x1x128xf32, #tpu.memory_space<vmem>>, vector<1x1x1x1x128xf32>
    %219 = vector.shape_cast %218 : vector<1x1x1x1x128xf32> to vector<1x128xf32>
    %c1_278 = arith.constant 1 : index
    %c0_279 = arith.constant 0 : index
    %c0_280 = arith.constant 0 : index
    %c0_281 = arith.constant 0 : index
    %c0_282 = arith.constant 0 : index
    %220 = vector.load %arg2[%c1_278, %c0_279, %c0_280, %c0_281, %c0_282] : memref<2x1x4x1x128xf32, #tpu.memory_space<vmem>>, vector<1x1x1x1x128xf32>
    %221 = vector.shape_cast %220 : vector<1x1x1x1x128xf32> to vector<1x128xf32>
    %c0_283 = arith.constant 0 : index
    %c0_284 = arith.constant 0 : index
    %c3_285 = arith.constant 3 : index
    %c0_286 = arith.constant 0 : index
    %c0_287 = arith.constant 0 : index
    %222 = vector.load %arg3[%c0_283, %c0_284, %c3_285, %c0_286, %c0_287] : memref<2x4x4x1x128xf32, #tpu.memory_space<vmem>>, vector<1x1x1x1x128xf32>
    %223 = vector.shape_cast %222 : vector<1x1x1x1x128xf32> to vector<1x128xf32>
    %c1_288 = arith.constant 1 : index
    %c0_289 = arith.constant 0 : index
    %c3_290 = arith.constant 3 : index
    %c0_291 = arith.constant 0 : index
    %c0_292 = arith.constant 0 : index
    %224 = vector.load %arg3[%c1_288, %c0_289, %c3_290, %c0_291, %c0_292] : memref<2x4x4x1x128xf32, #tpu.memory_space<vmem>>, vector<1x1x1x1x128xf32>
    %225 = vector.shape_cast %224 : vector<1x1x1x1x128xf32> to vector<1x128xf32>
    %226 = arith.mulf %219, %223 : vector<1x128xf32>
    %227 = arith.addf %216, %226 : vector<1x128xf32>
    %228 = arith.mulf %221, %225 : vector<1x128xf32>
    %229 = arith.subf %227, %228 : vector<1x128xf32>
    %230 = arith.mulf %219, %225 : vector<1x128xf32>
    %231 = arith.addf %217, %230 : vector<1x128xf32>
    %232 = arith.mulf %221, %223 : vector<1x128xf32>
    %233 = arith.addf %231, %232 : vector<1x128xf32>
    %c0_293 = arith.constant 0 : index
    %c0_294 = arith.constant 0 : index
    %c1_295 = arith.constant 1 : index
    %c0_296 = arith.constant 0 : index
    %c0_297 = arith.constant 0 : index
    %234 = vector.load %arg2[%c0_293, %c0_294, %c1_295, %c0_296, %c0_297] : memref<2x1x4x1x128xf32, #tpu.memory_space<vmem>>, vector<1x1x1x1x128xf32>
    %235 = vector.shape_cast %234 : vector<1x1x1x1x128xf32> to vector<1x128xf32>
    %c1_298 = arith.constant 1 : index
    %c0_299 = arith.constant 0 : index
    %c1_300 = arith.constant 1 : index
    %c0_301 = arith.constant 0 : index
    %c0_302 = arith.constant 0 : index
    %236 = vector.load %arg2[%c1_298, %c0_299, %c1_300, %c0_301, %c0_302] : memref<2x1x4x1x128xf32, #tpu.memory_space<vmem>>, vector<1x1x1x1x128xf32>
    %237 = vector.shape_cast %236 : vector<1x1x1x1x128xf32> to vector<1x128xf32>
    %c0_303 = arith.constant 0 : index
    %c1_304 = arith.constant 1 : index
    %c3_305 = arith.constant 3 : index
    %c0_306 = arith.constant 0 : index
    %c0_307 = arith.constant 0 : index
    %238 = vector.load %arg3[%c0_303, %c1_304, %c3_305, %c0_306, %c0_307] : memref<2x4x4x1x128xf32, #tpu.memory_space<vmem>>, vector<1x1x1x1x128xf32>
    %239 = vector.shape_cast %238 : vector<1x1x1x1x128xf32> to vector<1x128xf32>
    %c1_308 = arith.constant 1 : index
    %c1_309 = arith.constant 1 : index
    %c3_310 = arith.constant 3 : index
    %c0_311 = arith.constant 0 : index
    %c0_312 = arith.constant 0 : index
    %240 = vector.load %arg3[%c1_308, %c1_309, %c3_310, %c0_311, %c0_312] : memref<2x4x4x1x128xf32, #tpu.memory_space<vmem>>, vector<1x1x1x1x128xf32>
    %241 = vector.shape_cast %240 : vector<1x1x1x1x128xf32> to vector<1x128xf32>
    %242 = arith.mulf %235, %239 : vector<1x128xf32>
    %243 = arith.addf %229, %242 : vector<1x128xf32>
    %244 = arith.mulf %237, %241 : vector<1x128xf32>
    %245 = arith.subf %243, %244 : vector<1x128xf32>
    %246 = arith.mulf %235, %241 : vector<1x128xf32>
    %247 = arith.addf %233, %246 : vector<1x128xf32>
    %248 = arith.mulf %237, %239 : vector<1x128xf32>
    %249 = arith.addf %247, %248 : vector<1x128xf32>
    %c0_313 = arith.constant 0 : index
    %c0_314 = arith.constant 0 : index
    %c2_315 = arith.constant 2 : index
    %c0_316 = arith.constant 0 : index
    %c0_317 = arith.constant 0 : index
    %250 = vector.load %arg2[%c0_313, %c0_314, %c2_315, %c0_316, %c0_317] : memref<2x1x4x1x128xf32, #tpu.memory_space<vmem>>, vector<1x1x1x1x128xf32>
    %251 = vector.shape_cast %250 : vector<1x1x1x1x128xf32> to vector<1x128xf32>
    %c1_318 = arith.constant 1 : index
    %c0_319 = arith.constant 0 : index
    %c2_320 = arith.constant 2 : index
    %c0_321 = arith.constant 0 : index
    %c0_322 = arith.constant 0 : index
    %252 = vector.load %arg2[%c1_318, %c0_319, %c2_320, %c0_321, %c0_322] : memref<2x1x4x1x128xf32, #tpu.memory_space<vmem>>, vector<1x1x1x1x128xf32>
    %253 = vector.shape_cast %252 : vector<1x1x1x1x128xf32> to vector<1x128xf32>
    %c0_323 = arith.constant 0 : index
    %c2_324 = arith.constant 2 : index
    %c3_325 = arith.constant 3 : index
    %c0_326 = arith.constant 0 : index
    %c0_327 = arith.constant 0 : index
    %254 = vector.load %arg3[%c0_323, %c2_324, %c3_325, %c0_326, %c0_327] : memref<2x4x4x1x128xf32, #tpu.memory_space<vmem>>, vector<1x1x1x1x128xf32>
    %255 = vector.shape_cast %254 : vector<1x1x1x1x128xf32> to vector<1x128xf32>
    %c1_328 = arith.constant 1 : index
    %c2_329 = arith.constant 2 : index
    %c3_330 = arith.constant 3 : index
    %c0_331 = arith.constant 0 : index
    %c0_332 = arith.constant 0 : index
    %256 = vector.load %arg3[%c1_328, %c2_329, %c3_330, %c0_331, %c0_332] : memref<2x4x4x1x128xf32, #tpu.memory_space<vmem>>, vector<1x1x1x1x128xf32>
    %257 = vector.shape_cast %256 : vector<1x1x1x1x128xf32> to vector<1x128xf32>
    %258 = arith.mulf %251, %255 : vector<1x128xf32>
    %259 = arith.addf %245, %258 : vector<1x128xf32>
    %260 = arith.mulf %253, %257 : vector<1x128xf32>
    %261 = arith.subf %259, %260 : vector<1x128xf32>
    %262 = arith.mulf %251, %257 : vector<1x128xf32>
    %263 = arith.addf %249, %262 : vector<1x128xf32>
    %264 = arith.mulf %253, %255 : vector<1x128xf32>
    %265 = arith.addf %263, %264 : vector<1x128xf32>
    %c0_333 = arith.constant 0 : index
    %c0_334 = arith.constant 0 : index
    %c3_335 = arith.constant 3 : index
    %c0_336 = arith.constant 0 : index
    %c0_337 = arith.constant 0 : index
    %266 = vector.load %arg2[%c0_333, %c0_334, %c3_335, %c0_336, %c0_337] : memref<2x1x4x1x128xf32, #tpu.memory_space<vmem>>, vector<1x1x1x1x128xf32>
    %267 = vector.shape_cast %266 : vector<1x1x1x1x128xf32> to vector<1x128xf32>
    %c1_338 = arith.constant 1 : index
    %c0_339 = arith.constant 0 : index
    %c3_340 = arith.constant 3 : index
    %c0_341 = arith.constant 0 : index
    %c0_342 = arith.constant 0 : index
    %268 = vector.load %arg2[%c1_338, %c0_339, %c3_340, %c0_341, %c0_342] : memref<2x1x4x1x128xf32, #tpu.memory_space<vmem>>, vector<1x1x1x1x128xf32>
    %269 = vector.shape_cast %268 : vector<1x1x1x1x128xf32> to vector<1x128xf32>
    %c0_343 = arith.constant 0 : index
    %c3_344 = arith.constant 3 : index
    %c3_345 = arith.constant 3 : index
    %c0_346 = arith.constant 0 : index
    %c0_347 = arith.constant 0 : index
    %270 = vector.load %arg3[%c0_343, %c3_344, %c3_345, %c0_346, %c0_347] : memref<2x4x4x1x128xf32, #tpu.memory_space<vmem>>, vector<1x1x1x1x128xf32>
    %271 = vector.shape_cast %270 : vector<1x1x1x1x128xf32> to vector<1x128xf32>
    %c1_348 = arith.constant 1 : index
    %c3_349 = arith.constant 3 : index
    %c3_350 = arith.constant 3 : index
    %c0_351 = arith.constant 0 : index
    %c0_352 = arith.constant 0 : index
    %272 = vector.load %arg3[%c1_348, %c3_349, %c3_350, %c0_351, %c0_352] : memref<2x4x4x1x128xf32, #tpu.memory_space<vmem>>, vector<1x1x1x1x128xf32>
    %273 = vector.shape_cast %272 : vector<1x1x1x1x128xf32> to vector<1x128xf32>
    %274 = arith.mulf %267, %271 : vector<1x128xf32>
    %275 = arith.addf %261, %274 : vector<1x128xf32>
    %276 = arith.mulf %269, %273 : vector<1x128xf32>
    %277 = arith.subf %275, %276 : vector<1x128xf32>
    %278 = arith.mulf %267, %273 : vector<1x128xf32>
    %279 = arith.addf %265, %278 : vector<1x128xf32>
    %280 = arith.mulf %269, %271 : vector<1x128xf32>
    %281 = arith.addf %279, %280 : vector<1x128xf32>
    %c0_353 = arith.constant 0 : index
    %c0_354 = arith.constant 0 : index
    %c3_355 = arith.constant 3 : index
    %c0_356 = arith.constant 0 : index
    %c0_357 = arith.constant 0 : index
    %282 = vector.load %arg4[%c0_353, %c0_354, %c3_355, %c0_356, %c0_357] : memref<2x1x4x1x128xf32, #tpu.memory_space<vmem>>, vector<1x1x1x1x128xf32>
    %283 = vector.shape_cast %282 : vector<1x1x1x1x128xf32> to vector<1x128xf32>
    %284 = vector.shape_cast %277 : vector<1x128xf32> to vector<1x1x1x1x128xf32>
    tpu.vector_store %arg4[%c0_353, %c0_354, %c3_355, %c0_356, %c0_357], %284 {strides = array<i32>} : memref<2x1x4x1x128xf32, #tpu.memory_space<vmem>>, vector<1x1x1x1x128xf32>,
    %c1_358 = arith.constant 1 : index
    %c0_359 = arith.constant 0 : index
    %c3_360 = arith.constant 3 : index
    %c0_361 = arith.constant 0 : index
    %c0_362 = arith.constant 0 : index
    %285 = vector.load %arg4[%c1_358, %c0_359, %c3_360, %c0_361, %c0_362] : memref<2x1x4x1x128xf32, #tpu.memory_space<vmem>>, vector<1x1x1x1x128xf32>
    %286 = vector.shape_cast %285 : vector<1x1x1x1x128xf32> to vector<1x128xf32>
    %287 = vector.shape_cast %281 : vector<1x128xf32> to vector<1x1x1x1x128xf32>
    tpu.vector_store %arg4[%c1_358, %c0_359, %c3_360, %c0_361, %c0_362], %287 {strides = array<i32>} : memref<2x1x4x1x128xf32, #tpu.memory_space<vmem>>, vector<1x1x1x1x128xf32>,
    return
  }
  func.func @transform_0(%arg0: i32, %arg1: i32) -> (i32, i32, i32, i32, i32) {
    %c0_i32 = arith.constant 0 : i32
    %c0_i32_0 = arith.constant 0 : i32
    %c0_i32_1 = arith.constant 0 : i32
    %c0_i32_2 = arith.constant 0 : i32
    return %c0_i32, %arg1, %c0_i32_0, %arg0, %c0_i32_1 : i32, i32, i32, i32, i32
  }
  func.func @transform_1(%arg0: i32, %arg1: i32) -> (i32, i32, i32, i32, i32) {
    %c0_i32 = arith.constant 0 : i32
    %c0_i32_0 = arith.constant 0 : i32
    %c0_i32_1 = arith.constant 0 : i32
    %c0_i32_2 = arith.constant 0 : i32
    %c0_i32_3 = arith.constant 0 : i32
    return %c0_i32, %c0_i32_0, %c0_i32_1, %arg0, %c0_i32_2 : i32, i32, i32, i32, i32
  }
  func.func @transform_2(%arg0: i32, %arg1: i32) -> (i32, i32, i32, i32, i32) {
    %c0_i32 = arith.constant 0 : i32
    %c0_i32_0 = arith.constant 0 : i32
    %c0_i32_1 = arith.constant 0 : i32
    %c0_i32_2 = arith.constant 0 : i32
    return %c0_i32, %arg1, %c0_i32_0, %arg0, %c0_i32_1 : i32, i32, i32, i32, i32
  }
}

</mosaic_0001>

<llo_original>
// kernel: custom-call.1
$region0: #{custom-call.1}
  %s0 = inlined_call_operand.hbm [shape: c64[4,4,8,8], index: 0, kind: input, shape index: {}]
  %s1 = inlined_call_operand.vmem [shape: f32[4,4,8,8], index: 1, kind: output, shape index: {}]
  %s2 = scalar_lea.hbm %s0, 2048
  $region1: #{custom-call.1} parent=0
    #allocation0 [shape = 's32[1]{0}', space=sflag, size = 0x4, scoped, tag = 'scoped memory for custom-call.1']
    %3 = vsyncpa [#allocation0], 0
    %s4 = sshll.u32 %s1, 4
    %s5 = int_to_ptr.vmem [resolvable:$true] %s4
    %7 = dma.hbm_to_vmem [thread:$0]  %s2, 2048, %s5, [#allocation0]
    %8 = dma.done [#allocation0], 2048
    %9 = vsyncpa [#allocation0], 1

// kernel: custom-call
$region0: #{custom-call}
  %s0 = inlined_call_operand.hbm [shape: c64[4,4,8,8], index: 0, kind: input, shape index: {}]
  %s1 = inlined_call_operand.vmem [shape: f32[4,4,8,8], index: 1, kind: output, shape index: {}]
  $region1: #{custom-call} parent=0
    #allocation0 [shape = 's32[1]{0}', space=sflag, size = 0x4, scoped, tag = 'scoped memory for custom-call']
    %2 = vsyncpa [#allocation0], 0
    %s3 = sshll.u32 %s1, 4
    %s4 = int_to_ptr.vmem [resolvable:$true] %s3
    %6 = dma.hbm_to_vmem [thread:$0]  %s0, 2048, %s4, [#allocation0]
    %7 = dma.done [#allocation0], 2048
    %8 = vsyncpa [#allocation0], 1

// kernel: _lambda_.1
$region0: #{_lambda_.1}
  #allocation0 [shape = 'u32[]', space=smem, size = 0x4, offset = 0x4, fixed_abs, tag = 'smem constant byte address 0x4 - core index']
  #allocation1 [shape = 'u32[144,128]{1,0:T(1,128)}', space=vmem, size = 0x12000, scoped, tag = 'internal scratch']
  %s0 = inlined_call_operand.vmem [shape: f32[2,2,4,1,128], index: 0, kind: input, shape index: {}]
  %s1 = inlined_call_operand.vmem [shape: f32[2,4,4,1,128], index: 1, kind: input, shape index: {}]
  %s2 = inlined_call_operand.vmem [shape: f32[2,2,4,1,128], index: 2, kind: output, shape index: {}]
  %s3 = sld [smem:[#allocation0]]
  $region119: #{_lambda_.1} parent=0
    _
  %s5 = ssub.s32 1, %s3
  %s6 = scalar_select 0, %s5, %s3
  $region1: #{_lambda_.1} parent=0
    #allocation2 [shape = 'u8[8192]{0}', space=vmem, size = 0x2000, scoped, tag = 'input window, operand 0']
    #allocation3 [shape = 'u8[8192]{0}', space=vmem, size = 0x2000, scoped, tag = 'output window, operand 0']
    loop: start=0, step=1, limit=4
    $region2: #{_lambda_.1} parent=1 // loop_pre_header
      _
    $region3: #{_lambda_.1} parent=1 // loop_header
      %s8 = sphi 0, %s12
      %p9 = scmp.ge.s32.totalorder %s8, 4
      %s15 = sphi 0, %s27
      %s16 = sphi 0, %s23
      %s17 = sphi 0, %s15
      %s18 = sphi 0, %s16
      %s19 = sphi 0, %s17
      %s20 = sphi 0, %s18
      %s32 = sphi 0, %s34
      %s35 = sphi 0, %s32
      %s36 = sphi 0, %s35
      %s52 = sphi 0, %s36
      %s58 = sphi 0, %s60
      %s61 = sphi 0, %s58
      %s62 = sphi 0, %s61
      %s78 = sphi 0, %s62
      %s86 = sphi 0, %s88
      %s89 = sphi 0, %s86
      %s90 = sphi 0, %s89
      %s106 = sphi 0, %s90
    $region4: #{_lambda_.1} parent=1 // loop_header_branch
      %11 = sbr.rel (%p9) target = $region8
    $region5: #{_lambda_.1} parent=1 // loop_body
      %s13 = ssub.s32 %s8, 1
      %s14 = ssub.s32 %s8, 2
      %s21 = sadd.s32 1, %s16
      %p22 = scmp.ge.s32.totalorder %s21, 2
      %s23 = scalar_select %p22, 0, %s21
      %s24 = sadd.s32 1, %s15
      %s25 = scalar_select %p22, %s24, %s15
      %p26 = scmp.ge.s32.totalorder %s25, 1
      %s27 = scalar_select %p26, 0, %s25
      %s28 = ssub.s32 %s16, %s23
      %s29 = ssub.s32 %s15, %s27
      %s30 = sor.u32 %s28, %s29
      %p31 = scmp.eq.s32.totalorder %s30, 0
      %s33 = sadd.s32 %s32, 1
      %s34 = scalar_select %p31, %s32, %s33
      %p37 = pneg %p31
      %p38 = scmp.eq.s32.totalorder %s8, 1
      %p39 = por %p37, %p38
      %p40 = scmp.ne.s32.totalorder %s32, %s35
      %p41 = scmp.eq.s32.totalorder %s8, 0
      %p42 = por %p40, %p41
      %p43 = scmp.ne.s32.totalorder %s32, %s35
      %p44 = scmp.eq.s32.totalorder %s13, 1
      %p45 = por %p43, %p44
      %p46 = scmp.ne.s32.totalorder %s35, %s36
      %p47 = scmp.eq.s32.totalorder %s13, 0
      %p48 = por %p46, %p47
      %p49 = scmp.ne.s32.totalorder %s35, %s36
      %p50 = scmp.eq.s32.totalorder %s14, 1
      %p51 = por %p49, %p50
      %p53 = scmp.ne.s32.totalorder %s36, %s52
      %p54 = scmp.eq.s32.totalorder %s14, 0
      %p55 = por %p53, %p54
      %s56 = ssub.s32 %s15, %s27
      %p57 = scmp.eq.s32.totalorder %s56, 0
      %s59 = sadd.s32 %s58, 1
      %s60 = scalar_select %p57, %s58, %s59
      %p63 = pneg %p57
      %p64 = scmp.eq.s32.totalorder %s8, 1
      %p65 = por %p63, %p64
      %p66 = scmp.ne.s32.totalorder %s58, %s61
      %p67 = scmp.eq.s32.totalorder %s8, 0
      %p68 = por %p66, %p67
      %p69 = scmp.ne.s32.totalorder %s58, %s61
      %p70 = scmp.eq.s32.totalorder %s13, 1
      %p71 = por %p69, %p70
      %p72 = scmp.ne.s32.totalorder %s61, %s62
      %p73 = scmp.eq.s32.totalorder %s13, 0
      %p74 = por %p72, %p73
      %p75 = scmp.ne.s32.totalorder %s61, %s62
      %p76 = scmp.eq.s32.totalorder %s14, 1
      %p77 = por %p75, %p76
      %p79 = scmp.ne.s32.totalorder %s62, %s78
      %p80 = scmp.eq.s32.totalorder %s14, 0
      %p81 = por %p79, %p80
      %s82 = ssub.s32 %s16, %s23
      %s83 = ssub.s32 %s15, %s27
      %s84 = sor.u32 %s82, %s83
      %p85 = scmp.eq.s32.totalorder %s84, 0
      %s87 = sadd.s32 %s86, 1
      %s88 = scalar_select %p85, %s86, %s87
      %p91 = pneg %p85
      %p92 = scmp.eq.s32.totalorder %s8, 1
      %p93 = por %p91, %p92
      %p94 = scmp.ne.s32.totalorder %s86, %s89
      %p95 = scmp.eq.s32.totalorder %s8, 0
      %p96 = por %p94, %p95
      %p97 = scmp.ne.s32.totalorder %s86, %s89
      %p98 = scmp.eq.s32.totalorder %s13, 1
      %p99 = por %p97, %p98
      %p100 = scmp.ne.s32.totalorder %s89, %s90
      %p101 = scmp.eq.s32.totalorder %s13, 0
      %p102 = por %p100, %p101
      %p103 = scmp.ne.s32.totalorder %s89, %s90
      %p104 = scmp.eq.s32.totalorder %s14, 1
      %p105 = por %p103, %p104
      %p107 = scmp.ne.s32.totalorder %s90, %s106
      %p108 = scmp.eq.s32.totalorder %s14, 0
      %p109 = por %p107, %p108
      %p110 = scmp.le.s32.totalorder 1, %s8
      %p111 = scmp.lt.s32.totalorder %s8, 3
      %p112 = pnand %p110, %p111
      %p113 = pneg %p112
      // Predicated region
      $region9: #{_lambda_.1} parent=5 // pred_check
        _
      $region10: #{_lambda_.1} parent=5 // pred_check_branch
        %115 = sbr.rel (%p112) target = $region12
      $region11: #{_lambda_.1} parent=5 // pred_region
        %s116 = ssub.s32 %s8, 1
        // Predicated region
        $region13: #{_lambda_.1} parent=11 // pred_check
          %p117 = pneg %p74
        $region14: #{_lambda_.1} parent=11 // pred_check_branch
          %119 = sbr.rel (%p117) target = $region16
        $region15: #{_lambda_.1} parent=11 // pred_region
          %p120 = scmp.lt.s32.totalorder %s17, 0
          %s121 = scalar_select %p120, %s17, 0
          %s122 = scalar_lea.vmem %s1, %s121
        $region16: #{_lambda_.1} parent=11 // pred_fallthru
          _
      $region12: #{_lambda_.1} parent=5 // pred_fallthru
        _
      %p123 = scmp.lt.s32.totalorder %s8, 2
      // Predicated region
      $region17: #{_lambda_.1} parent=5 // pred_check
        %p124 = pneg %p123
      $region18: #{_lambda_.1} parent=5 // pred_check_branch
        %126 = sbr.rel (%p124) target = $region20
      $region19: #{_lambda_.1} parent=5 // pred_region
        // Predicated region
        $region21: #{_lambda_.1} parent=19 // pred_check
          %p127 = pneg %p42
        $region22: #{_lambda_.1} parent=19 // pred_check_branch
          %129 = sbr.rel (%p127) target = $region24
        $region23: #{_lambda_.1} parent=19 // pred_region
          %s130 = sand.u32 %s32, 1
          %s131 = sand.u32 %s32, 1
          %s132 = smul.addr %s131, 8
          %s133 = scalar_lea.vmem [#allocation2], %s132
          %s134 = smul.addr %s16, 4
          %s135 = sadd.s32 %s15, %s134
          %s136 = scalar_lea.vmem %s0, %s135
          // Predicated region
          $region25: #{_lambda_.1} parent=23 // pred_check
            _
          $region26: #{_lambda_.1} parent=23 // pred_check_branch
            %138 = sbr.rel (0) target = $region28
          $region27: #{_lambda_.1} parent=23 // pred_region
            // Predicated region
            $region29: #{_lambda_.1} parent=27 // pred_check
              _
            $region30: #{_lambda_.1} parent=27 // pred_check_branch
              %140 = sbr.rel target = $region32
            $region31: #{_lambda_.1} parent=27 // pred_region
              // Predicated region
              $region44: #{_lambda_.1} parent=31 // pred_check
                _
              $region45: #{_lambda_.1} parent=31 // pred_check_branch
                %158 = sbr.rel (0) target = $region47
              $region46: #{_lambda_.1} parent=31 // pred_region
                loop: start=0, step=1, limit=1
                $region48: #{_lambda_.1} parent=46 // loop_pre_header
                  _
                $region49: #{_lambda_.1} parent=46 // loop_header
                  %s160 = sphi 0, %s164
                  %p161 = scmp.ge.s32.totalorder %s160, 1
                  %s165 = sphi %s136, %s136
                  %s166 = sphi %s133, %s133
                $region50: #{_lambda_.1} parent=46 // loop_header_branch
                  %163 = sbr.rel (%p161) target = $region54
                $region51: #{_lambda_.1} parent=46 // loop_body
                  _
                $region52: #{_lambda_.1} parent=46 // loop_footer
                  %s164 = sadd.s32 1, %s160
                $region53: #{_lambda_.1} parent=46 // loop_footer_branch
                  %159 = sbr.rel target = $region49
                $region54: #{_lambda_.1} parent=46 // loop_exit
                  _
                %s168 = ssub.s32 16, 1
                loop: start=0, step=1, limit=1
                $region55: #{_lambda_.1} parent=46 // loop_pre_header
                  _
                $region56: #{_lambda_.1} parent=46 // loop_header
                  %s170 = sphi 0, %s174
                  %p171 = scmp.ge.s32.totalorder %s170, 1
                  %s175 = sphi %s136, %s136
                  %s176 = sphi %s133, %s133
                $region57: #{_lambda_.1} parent=46 // loop_header_branch
                  %173 = sbr.rel (%p171) target = $region61
                $region58: #{_lambda_.1} parent=46 // loop_body
                  %v177 = vld [vmem:[%s175] sm:%s168]
                  %178 = vst [vmem:[%s176] sm:%s168] %v177
                  %v179 = vld [vmem:[%s175 + $0x8] sm:%s168]
                  %180 = vst [vmem:[%s176 + $0x4] sm:%s168] %v179
                $region59: #{_lambda_.1} parent=46 // loop_footer
                  %s174 = sadd.s32 1, %s170
                $region60: #{_lambda_.1} parent=46 // loop_footer_branch
                  %169 = sbr.rel target = $region56
                $region61: #{_lambda_.1} parent=46 // loop_exit
                  _
              $region47: #{_lambda_.1} parent=31 // pred_fallthru
                _
            $region32: #{_lambda_.1} parent=27 // pred_fallthru
              _
            // Predicated region
            $region33: #{_lambda_.1} parent=27 // pred_check
              _
            $region34: #{_lambda_.1} parent=27 // pred_check_branch
              %142 = sbr.rel (0) target = $region36
            $region35: #{_lambda_.1} parent=27 // pred_region
              %s144 = ssub.s32 16, 1
              loop: start=0, step=1, limit=1
              $region37: #{_lambda_.1} parent=35 // loop_pre_header
                _
              $region38: #{_lambda_.1} parent=35 // loop_header
                %s146 = sphi 0, %s150
                %p147 = scmp.ge.s32.totalorder %s146, 1
                %s151 = sphi %s136, %s136
                %s152 = sphi %s133, %s133
              $region39: #{_lambda_.1} parent=35 // loop_header_branch
                %149 = sbr.rel (%p147) target = $region43
              $region40: #{_lambda_.1} parent=35 // loop_body
                %v153 = vld [vmem:[%s151] sm:%s144]
                %154 = vst [vmem:[%s152] sm:%s144] %v153
                %v155 = vld [vmem:[%s151 + $0x8] sm:%s144]
                %156 = vst [vmem:[%s152 + $0x4] sm:%s144] %v155
              $region41: #{_lambda_.1} parent=35 // loop_footer
                %s150 = sadd.s32 1, %s146
              $region42: #{_lambda_.1} parent=35 // loop_footer_branch
                %145 = sbr.rel target = $region38
              $region43: #{_lambda_.1} parent=35 // loop_exit
                _
            $region36: #{_lambda_.1} parent=27 // pred_fallthru
              _
          $region28: #{_lambda_.1} parent=23 // pred_fallthru
            _
          %181 = vnop
        $region24: #{_lambda_.1} parent=19 // pred_fallthru
          _
      $region20: #{_lambda_.1} parent=5 // pred_fallthru
        _
      %p182 = scmp.le.s32.totalorder 1, %s8
      %p183 = scmp.lt.s32.totalorder %s8, 3
      %p184 = pnand %p182, %p183
      %p185 = pneg %p184
      // Predicated region
      $region62: #{_lambda_.1} parent=5 // pred_check
        _
      $region63: #{_lambda_.1} parent=5 // pred_check_branch
        %187 = sbr.rel (%p184) target = $region65
      $region64: #{_lambda_.1} parent=5 // pred_region
        %s188 = ssub.s32 %s8, 1
        %s189 = sand.u32 %s35, 1
        %s190 = sand.u32 %s35, 1
        %s191 = smul.addr %s190, 8
        %s192 = scalar_lea.vmem [#allocation2], %s191
        // Predicated region
        $region66: #{_lambda_.1} parent=64 // pred_check
          %p193 = pneg %p48
        $region67: #{_lambda_.1} parent=64 // pred_check_branch
          %195 = sbr.rel (%p193) target = $region69
        $region68: #{_lambda_.1} parent=64 // pred_region
          _
        $region69: #{_lambda_.1} parent=64 // pred_fallthru
          _
        %s196 = sand.u32 %s35, 1
        %s197 = sand.u32 %s35, 1
        %s198 = smul.addr %s197, 8
        %s199 = scalar_lea.vmem [#allocation2], %s198
        %p200 = pneg %p48
        %p201 = pneg %p45
        %p202 = scmp.lt.s32.totalorder %s17, 0
        %s203 = scalar_select %p202, %s17, 0
        %s204 = scalar_lea.vmem %s1, %s203
        %p205 = pneg %p74
        %p206 = pneg %p71
        %p207 = pneg %p102
        %p208 = pneg %p99
        %s209 = sand.u32 %s89, 1
        %s210 = sand.u32 %s89, 1
        %s211 = smul.addr %s210, 8
        %s212 = scalar_lea.vmem [#allocation3], %s211
        %p213 = scmp.lt.s32.totalorder %s17, 0
        %s214 = scalar_select %p213, %s17, 0
        %s215 = scalar_lea.vmem %s1, %s214
        %v216 = vld [vmem:[%s192] sm:$0x1]
        %s217 = scalar_lea.vmem %s192, 4 [#allocation2]
        %v218 = vld [vmem:[%s217] sm:$0x1]
        %v219 = vld [vmem:[%s215] sm:$0x1]
        %s220 = scalar_lea.vmem %s215, 16
        %v221 = vld [vmem:[%s220] sm:$0x1]
        %v222 = vmul.f32 %v216, %v219
        %v223 = vadd.f32 %v222, 0.0
        %v224 = vmul.f32 %v218, %v221
        %v225 = vsub.f32 %v223, %v224
        %v226 = vmul.f32 %v216, %v221
        %v227 = vadd.f32 %v226, 0.0
        %v228 = vmul.f32 %v218, %v219
        %v229 = vadd.f32 %v227, %v228
        %s230 = scalar_lea.vmem %s192, 1 [#allocation2]
        %v231 = vld [vmem:[%s230] sm:$0x1]
        %s232 = scalar_lea.vmem %s192, 5 [#allocation2]
        %v233 = vld [vmem:[%s232] sm:$0x1]
        %s234 = scalar_lea.vmem %s215, 4
        %v235 = vld [vmem:[%s234] sm:$0x1]
        %s236 = scalar_lea.vmem %s215, 20
        %v237 = vld [vmem:[%s236] sm:$0x1]
        %v238 = vmul.f32 %v231, %v235
        %v239 = vadd.f32 %v225, %v238
        %v240 = vmul.f32 %v233, %v237
        %v241 = vsub.f32 %v239, %v240
        %v242 = vmul.f32 %v231, %v237
        %v243 = vadd.f32 %v229, %v242
        %v244 = vmul.f32 %v233, %v235
        %v245 = vadd.f32 %v243, %v244
        %s246 = scalar_lea.vmem %s192, 2 [#allocation2]
        %v247 = vld [vmem:[%s246] sm:$0x1]
        %s248 = scalar_lea.vmem %s192, 6 [#allocation2]
        %v249 = vld [vmem:[%s248] sm:$0x1]
        %s250 = scalar_lea.vmem %s215, 8
        %v251 = vld [vmem:[%s250] sm:$0x1]
        %s252 = scalar_lea.vmem %s215, 24
        %v253 = vld [vmem:[%s252] sm:$0x1]
        %v254 = vmul.f32 %v247, %v251
        %v255 = vadd.f32 %v241, %v254
        %v256 = vmul.f32 %v249, %v253
        %v257 = vsub.f32 %v255, %v256
        %v258 = vmul.f32 %v247, %v253
        %v259 = vadd.f32 %v245, %v258
        %v260 = vmul.f32 %v249, %v251
        %v261 = vadd.f32 %v259, %v260
        %s262 = scalar_lea.vmem %s192, 3 [#allocation2]
        %v263 = vld [vmem:[%s262] sm:$0x1]
        %s264 = scalar_lea.vmem %s192, 7 [#allocation2]
        %v265 = vld [vmem:[%s264] sm:$0x1]
        %s266 = scalar_lea.vmem %s215, 12
        %v267 = vld [vmem:[%s266] sm:$0x1]
        %s268 = scalar_lea.vmem %s215, 28
        %v269 = vld [vmem:[%s268] sm:$0x1]
        %v270 = vmul.f32 %v263, %v267
        %v271 = vadd.f32 %v257, %v270
        %v272 = vmul.f32 %v265, %v269
        %v273 = vsub.f32 %v271, %v272
        %v274 = vmul.f32 %v263, %v269
        %v275 = vadd.f32 %v261, %v274
        %v276 = vmul.f32 %v265, %v267
        %v277 = vadd.f32 %v275, %v276
        %278 = vst [vmem:[%s212] sm:$0x1] %v273
        %s279 = scalar_lea.vmem %s212, 4 [#allocation3]
        %280 = vst [vmem:[%s279] sm:$0x1] %v277
        %v281 = vld [vmem:[%s192] sm:$0x1]
        %v282 = vld [vmem:[%s217] sm:$0x1]
        %s283 = scalar_lea.vmem %s215, 1
        %v284 = vld [vmem:[%s283] sm:$0x1]
        %s285 = scalar_lea.vmem %s215, 17
        %v286 = vld [vmem:[%s285] sm:$0x1]
        %v287 = vmul.f32 %v281, %v284
        %v288 = vadd.f32 %v287, 0.0
        %v289 = vmul.f32 %v282, %v286
        %v290 = vsub.f32 %v288, %v289
        %v291 = vmul.f32 %v281, %v286
        %v292 = vadd.f32 %v291, 0.0
        %v293 = vmul.f32 %v282, %v284
        %v294 = vadd.f32 %v292, %v293
        %v295 = vld [vmem:[%s230] sm:$0x1]
        %v296 = vld [vmem:[%s232] sm:$0x1]
        %s297 = scalar_lea.vmem %s215, 5
        %v298 = vld [vmem:[%s297] sm:$0x1]
        %s299 = scalar_lea.vmem %s215, 21
        %v300 = vld [vmem:[%s299] sm:$0x1]
        %v301 = vmul.f32 %v295, %v298
        %v302 = vadd.f32 %v290, %v301
        %v303 = vmul.f32 %v296, %v300
        %v304 = vsub.f32 %v302, %v303
        %v305 = vmul.f32 %v295, %v300
        %v306 = vadd.f32 %v294, %v305
        %v307 = vmul.f32 %v296, %v298
        %v308 = vadd.f32 %v306, %v307
        %v309 = vld [vmem:[%s246] sm:$0x1]
        %v310 = vld [vmem:[%s248] sm:$0x1]
        %s311 = scalar_lea.vmem %s215, 9
        %v312 = vld [vmem:[%s311] sm:$0x1]
        %s313 = scalar_lea.vmem %s215, 25
        %v314 = vld [vmem:[%s313] sm:$0x1]
        %v315 = vmul.f32 %v309, %v312
        %v316 = vadd.f32 %v304, %v315
        %v317 = vmul.f32 %v310, %v314
        %v318 = vsub.f32 %v316, %v317
        %v319 = vmul.f32 %v309, %v314
        %v320 = vadd.f32 %v308, %v319
        %v321 = vmul.f32 %v310, %v312
        %v322 = vadd.f32 %v320, %v321
        %v323 = vld [vmem:[%s262] sm:$0x1]
        %v324 = vld [vmem:[%s264] sm:$0x1]
        %s325 = scalar_lea.vmem %s215, 13
        %v326 = vld [vmem:[%s325] sm:$0x1]
        %s327 = scalar_lea.vmem %s215, 29
        %v328 = vld [vmem:[%s327] sm:$0x1]
        %v329 = vmul.f32 %v323, %v326
        %v330 = vadd.f32 %v318, %v329
        %v331 = vmul.f32 %v324, %v328
        %v332 = vsub.f32 %v330, %v331
        %v333 = vmul.f32 %v323, %v328
        %v334 = vadd.f32 %v322, %v333
        %v335 = vmul.f32 %v324, %v326
        %v336 = vadd.f32 %v334, %v335
        %s337 = scalar_lea.vmem %s212, 1 [#allocation3]
        %338 = vst [vmem:[%s337] sm:$0x1] %v332
        %s339 = scalar_lea.vmem %s212, 5 [#allocation3]
        %340 = vst [vmem:[%s339] sm:$0x1] %v336
        %v341 = vld [vmem:[%s192] sm:$0x1]
        %v342 = vld [vmem:[%s217] sm:$0x1]
        %s343 = scalar_lea.vmem %s215, 2
        %v344 = vld [vmem:[%s343] sm:$0x1]
        %s345 = scalar_lea.vmem %s215, 18
        %v346 = vld [vmem:[%s345] sm:$0x1]
        %v347 = vmul.f32 %v341, %v344
        %v348 = vadd.f32 %v347, 0.0
        %v349 = vmul.f32 %v342, %v346
        %v350 = vsub.f32 %v348, %v349
        %v351 = vmul.f32 %v341, %v346
        %v352 = vadd.f32 %v351, 0.0
        %v353 = vmul.f32 %v342, %v344
        %v354 = vadd.f32 %v352, %v353
        %v355 = vld [vmem:[%s230] sm:$0x1]
        %v356 = vld [vmem:[%s232] sm:$0x1]
        %s357 = scalar_lea.vmem %s215, 6
        %v358 = vld [vmem:[%s357] sm:$0x1]
        %s359 = scalar_lea.vmem %s215, 22
        %v360 = vld [vmem:[%s359] sm:$0x1]
        %v361 = vmul.f32 %v355, %v358
        %v362 = vadd.f32 %v350, %v361
        %v363 = vmul.f32 %v356, %v360
        %v364 = vsub.f32 %v362, %v363
        %v365 = vmul.f32 %v355, %v360
        %v366 = vadd.f32 %v354, %v365
        %v367 = vmul.f32 %v356, %v358
        %v368 = vadd.f32 %v366, %v367
        %v369 = vld [vmem:[%s246] sm:$0x1]
        %v370 = vld [vmem:[%s248] sm:$0x1]
        %s371 = scalar_lea.vmem %s215, 10
        %v372 = vld [vmem:[%s371] sm:$0x1]
        %s373 = scalar_lea.vmem %s215, 26
        %v374 = vld [vmem:[%s373] sm:$0x1]
        %v375 = vmul.f32 %v369, %v372
        %v376 = vadd.f32 %v364, %v375
        %v377 = vmul.f32 %v370, %v374
        %v378 = vsub.f32 %v376, %v377
        %v379 = vmul.f32 %v369, %v374
        %v380 = vadd.f32 %v368, %v379
        %v381 = vmul.f32 %v370, %v372
        %v382 = vadd.f32 %v380, %v381
        %v383 = vld [vmem:[%s262] sm:$0x1]
        %v384 = vld [vmem:[%s264] sm:$0x1]
        %s385 = scalar_lea.vmem %s215, 14
        %v386 = vld [vmem:[%s385] sm:$0x1]
        %s387 = scalar_lea.vmem %s215, 30
        %v388 = vld [vmem:[%s387] sm:$0x1]
        %v389 = vmul.f32 %v383, %v386
        %v390 = vadd.f32 %v378, %v389
        %v391 = vmul.f32 %v384, %v388
        %v392 = vsub.f32 %v390, %v391
        %v393 = vmul.f32 %v383, %v388
        %v394 = vadd.f32 %v382, %v393
        %v395 = vmul.f32 %v384, %v386
        %v396 = vadd.f32 %v394, %v395
        %s397 = scalar_lea.vmem %s212, 2 [#allocation3]
        %398 = vst [vmem:[%s397] sm:$0x1] %v392
        %s399 = scalar_lea.vmem %s212, 6 [#allocation3]
        %400 = vst [vmem:[%s399] sm:$0x1] %v396
        %v401 = vld [vmem:[%s192] sm:$0x1]
        %v402 = vld [vmem:[%s217] sm:$0x1]
        %s403 = scalar_lea.vmem %s215, 3
        %v404 = vld [vmem:[%s403] sm:$0x1]
        %s405 = scalar_lea.vmem %s215, 19
        %v406 = vld [vmem:[%s405] sm:$0x1]
        %v407 = vmul.f32 %v401, %v404
        %v408 = vadd.f32 %v407, 0.0
        %v409 = vmul.f32 %v402, %v406
        %v410 = vsub.f32 %v408, %v409
        %v411 = vmul.f32 %v401, %v406
        %v412 = vadd.f32 %v411, 0.0
        %v413 = vmul.f32 %v402, %v404
        %v414 = vadd.f32 %v412, %v413
        %v415 = vld [vmem:[%s230] sm:$0x1]
        %v416 = vld [vmem:[%s232] sm:$0x1]
        %s417 = scalar_lea.vmem %s215, 7
        %v418 = vld [vmem:[%s417] sm:$0x1]
        %s419 = scalar_lea.vmem %s215, 23
        %v420 = vld [vmem:[%s419] sm:$0x1]
        %v421 = vmul.f32 %v415, %v418
        %v422 = vadd.f32 %v410, %v421
        %v423 = vmul.f32 %v416, %v420
        %v424 = vsub.f32 %v422, %v423
        %v425 = vmul.f32 %v415, %v420
        %v426 = vadd.f32 %v414, %v425
        %v427 = vmul.f32 %v416, %v418
        %v428 = vadd.f32 %v426, %v427
        %v429 = vld [vmem:[%s246] sm:$0x1]
        %v430 = vld [vmem:[%s248] sm:$0x1]
        %s431 = scalar_lea.vmem %s215, 11
        %v432 = vld [vmem:[%s431] sm:$0x1]
        %s433 = scalar_lea.vmem %s215, 27
        %v434 = vld [vmem:[%s433] sm:$0x1]
        %v435 = vmul.f32 %v429, %v432
        %v436 = vadd.f32 %v424, %v435
        %v437 = vmul.f32 %v430, %v434
        %v438 = vsub.f32 %v436, %v437
        %v439 = vmul.f32 %v429, %v434
        %v440 = vadd.f32 %v428, %v439
        %v441 = vmul.f32 %v430, %v432
        %v442 = vadd.f32 %v440, %v441
        %v443 = vld [vmem:[%s262] sm:$0x1]
        %v444 = vld [vmem:[%s264] sm:$0x1]
        %s445 = scalar_lea.vmem %s215, 15
        %v446 = vld [vmem:[%s445] sm:$0x1]
        %s447 = scalar_lea.vmem %s215, 31
        %v448 = vld [vmem:[%s447] sm:$0x1]
        %v449 = vmul.f32 %v443, %v446
        %v450 = vadd.f32 %v438, %v449
        %v451 = vmul.f32 %v444, %v448
        %v452 = vsub.f32 %v450, %v451
        %v453 = vmul.f32 %v443, %v448
        %v454 = vadd.f32 %v442, %v453
        %v455 = vmul.f32 %v444, %v446
        %v456 = vadd.f32 %v454, %v455
        %s457 = scalar_lea.vmem %s212, 3 [#allocation3]
        %458 = vst [vmem:[%s457] sm:$0x1] %v452
        %s459 = scalar_lea.vmem %s212, 7 [#allocation3]
        %460 = vst [vmem:[%s459] sm:$0x1] %v456
        %s461 = sand.u32 %s89, 1
        %s462 = sand.u32 %s89, 1
        %s463 = smul.addr %s462, 8
        %s464 = scalar_lea.vmem [#allocation3], %s463
        // Predicated region
        $region70: #{_lambda_.1} parent=64 // pred_check
          %p465 = pneg %p99
        $region71: #{_lambda_.1} parent=64 // pred_check_branch
          %467 = sbr.rel (%p465) target = $region73
        $region72: #{_lambda_.1} parent=64 // pred_region
          %s468 = smul.addr %s18, 4
          %s469 = sadd.s32 %s17, %s468
          %s470 = scalar_lea.vmem %s2, %s469
          // Predicated region
          $region74: #{_lambda_.1} parent=72 // pred_check
            _
          $region75: #{_lambda_.1} parent=72 // pred_check_branch
            %472 = sbr.rel (0) target = $region77
          $region76: #{_lambda_.1} parent=72 // pred_region
            // Predicated region
            $region78: #{_lambda_.1} parent=76 // pred_check
              _
            $region79: #{_lambda_.1} parent=76 // pred_check_branch
              %474 = sbr.rel target = $region81
            $region80: #{_lambda_.1} parent=76 // pred_region
              // Predicated region
              $region93: #{_lambda_.1} parent=80 // pred_check
                _
              $region94: #{_lambda_.1} parent=80 // pred_check_branch
                %492 = sbr.rel (0) target = $region96
              $region95: #{_lambda_.1} parent=80 // pred_region
                loop: start=0, step=1, limit=1
                $region97: #{_lambda_.1} parent=95 // loop_pre_header
                  _
                $region98: #{_lambda_.1} parent=95 // loop_header
                  %s494 = sphi 0, %s498
                  %p495 = scmp.ge.s32.totalorder %s494, 1
                  %s499 = sphi %s464, %s464
                  %s500 = sphi %s470, %s470
                $region99: #{_lambda_.1} parent=95 // loop_header_branch
                  %497 = sbr.rel (%p495) target = $region103
                $region100: #{_lambda_.1} parent=95 // loop_body
                  _
                $region101: #{_lambda_.1} parent=95 // loop_footer
                  %s498 = sadd.s32 1, %s494
                $region102: #{_lambda_.1} parent=95 // loop_footer_branch
                  %493 = sbr.rel target = $region98
                $region103: #{_lambda_.1} parent=95 // loop_exit
                  _
                %s502 = ssub.s32 16, 1
                loop: start=0, step=1, limit=1
                $region104: #{_lambda_.1} parent=95 // loop_pre_header
                  _
                $region105: #{_lambda_.1} parent=95 // loop_header
                  %s504 = sphi 0, %s508
                  %p505 = scmp.ge.s32.totalorder %s504, 1
                  %s509 = sphi %s464, %s464
                  %s510 = sphi %s470, %s470
                $region106: #{_lambda_.1} parent=95 // loop_header_branch
                  %507 = sbr.rel (%p505) target = $region110
                $region107: #{_lambda_.1} parent=95 // loop_body
                  %v511 = vld [vmem:[%s509] sm:%s502]
                  %512 = vst [vmem:[%s510] sm:%s502] %v511
                  %v513 = vld [vmem:[%s509 + $0x4] sm:%s502]
                  %514 = vst [vmem:[%s510 + $0x8] sm:%s502] %v513
                $region108: #{_lambda_.1} parent=95 // loop_footer
                  %s508 = sadd.s32 1, %s504
                $region109: #{_lambda_.1} parent=95 // loop_footer_branch
                  %503 = sbr.rel target = $region105
                $region110: #{_lambda_.1} parent=95 // loop_exit
                  _
              $region96: #{_lambda_.1} parent=80 // pred_fallthru
                _
            $region81: #{_lambda_.1} parent=76 // pred_fallthru
              _
            // Predicated region
            $region82: #{_lambda_.1} parent=76 // pred_check
              _
            $region83: #{_lambda_.1} parent=76 // pred_check_branch
              %476 = sbr.rel (0) target = $region85
            $region84: #{_lambda_.1} parent=76 // pred_region
              %s478 = ssub.s32 16, 1
              loop: start=0, step=1, limit=1
              $region86: #{_lambda_.1} parent=84 // loop_pre_header
                _
              $region87: #{_lambda_.1} parent=84 // loop_header
                %s480 = sphi 0, %s484
                %p481 = scmp.ge.s32.totalorder %s480, 1
                %s485 = sphi %s464, %s464
                %s486 = sphi %s470, %s470
              $region88: #{_lambda_.1} parent=84 // loop_header_branch
                %483 = sbr.rel (%p481) target = $region92
              $region89: #{_lambda_.1} parent=84 // loop_body
                %v487 = vld [vmem:[%s485] sm:%s478]
                %488 = vst [vmem:[%s486] sm:%s478] %v487
                %v489 = vld [vmem:[%s485 + $0x4] sm:%s478]
                %490 = vst [vmem:[%s486 + $0x8] sm:%s478] %v489
              $region90: #{_lambda_.1} parent=84 // loop_footer
                %s484 = sadd.s32 1, %s480
              $region91: #{_lambda_.1} parent=84 // loop_footer_branch
                %479 = sbr.rel target = $region87
              $region92: #{_lambda_.1} parent=84 // loop_exit
                _
            $region85: #{_lambda_.1} parent=76 // pred_fallthru
              _
          $region77: #{_lambda_.1} parent=72 // pred_fallthru
            _
          %515 = vnop
        $region73: #{_lambda_.1} parent=64 // pred_fallthru
          _
      $region65: #{_lambda_.1} parent=5 // pred_fallthru
        _
      %p516 = scmp.le.s32.totalorder 2, %s8
      // Predicated region
      $region111: #{_lambda_.1} parent=5 // pred_check
        %p517 = pneg %p516
      $region112: #{_lambda_.1} parent=5 // pred_check_branch
        %519 = sbr.rel (%p517) target = $region114
      $region113: #{_lambda_.1} parent=5 // pred_region
        %s520 = ssub.s32 %s8, 2
        // Predicated region
        $region115: #{_lambda_.1} parent=113 // pred_check
          %p521 = pneg %p105
        $region116: #{_lambda_.1} parent=113 // pred_check_branch
          %523 = sbr.rel (%p521) target = $region118
        $region117: #{_lambda_.1} parent=113 // pred_region
          %s524 = sand.u32 %s90, 1
          %s525 = sand.u32 %s90, 1
          %s526 = smul.addr %s525, 8
          %s527 = scalar_lea.vmem [#allocation3], %s526
        $region118: #{_lambda_.1} parent=113 // pred_fallthru
          _
      $region114: #{_lambda_.1} parent=5 // pred_fallthru
        _
    $region6: #{_lambda_.1} parent=1 // loop_footer
      %s12 = sadd.s32 1, %s8
    $region7: #{_lambda_.1} parent=1 // loop_footer_branch
      %7 = sbr.rel target = $region3
    $region8: #{_lambda_.1} parent=1 // loop_exit
      _

</llo_original>
